<compile_context>
chip_gen: v7x
topology: tpu7x:2x2x1
jax: 0.10.0
libtpu: 0.0.40
codegen_flags: <defaults>
</compile_context>

<pallas_src>
import math
import functools

import jax
import jax.numpy as jnp
from jax import lax
from jax.experimental import pallas as pl
from jax.experimental.pallas import tpu as pltpu

BINS = 256
SIGMA = 0.01

TILE_N = 8           # rows (of the concatenated 2*B*C) per block (sublane multiple)
SUB_P = 512          # pixels per compute sub-chunk (bounds the (8, SUB_P, 128) temps)
MAX_DMA_P = 2048     # pixels per grid block (DMA tile)
WINDOW = 128         # bins evaluated per pixel (lane-dense window)
SEG_STRIDE = 64      # stride of the overlapping 128-wide bin segments
NSEG = (BINS - WINDOW) // SEG_STRIDE + 1   # 3 segments: [0,128) [64,192) [128,256)
NSEG_PAD = 8         # pad segment axis to a sublane multiple (MXU-friendly M dim)


def _soft_hist_kernel(x_ref, h_ref, acc, *, sigma, bins, sub_p):
    """x_ref : (TILE_N, dma_p) f32 pixel chunk (rows are target|prediction planes)
       h_ref : (1, TILE_N, bins) f32 raw (unnormalized) histograms
       acc   : (TILE_N, NSEG_PAD, WINDOW) f32 per-segment accumulator
    """
    c = pl.program_id(2)                      # pixel-chunk index (innermost, "arbitrary")

    @pl.when(c == 0)
    def _init():
        acc[...] = jnp.zeros_like(acc)

    tile_n, dma_p = x_ref.shape
    n_sub = dma_p // sub_p
    delta = 1.0 / (bins - 1.0)                       # bin spacing
    c2 = -0.5 * (delta / sigma) ** 2                 # folded Gaussian constant (norm dropped)
    half_margin = float((WINDOW - SEG_STRIDE) // 2)

    # per-step constants, hoisted above the sub-chunk loop
    lane = lax.broadcasted_iota(jnp.int32, (1, 1, WINDOW), 2).astype(jnp.float32)
    seg_ids = lax.broadcasted_iota(jnp.int32, (1, NSEG_PAD, 1), 1).astype(jnp.float32)

    def body(s, carry):
        off = pl.multiple_of(s * sub_p, 128)
        x = x_ref[:, pl.ds(off, sub_p)]                           # (tile_n, sub_p)
        u = x * (bins - 1.0)                                      # continuous bin coord
        seg = jnp.clip(jnp.floor((u - half_margin) * (1.0 / SEG_STRIDE)),
                       0.0, float(NSEG - 1))                      # segment id per pixel
        e = u - seg * float(SEG_STRIDE)                           # coord within its window
        # full-size chain: 1 sub, 1 mul, 1 mul, exp (EUP), 1 pack-to-bf16
        db = e[:, :, None] - lane                                 # (tile_n, sub_p, WINDOW)
        w = jnp.exp(c2 * (db * db)).astype(jnp.bfloat16)
        # one-hot segment selector; scatter into segments + reduce over pixels on the MXU
        sel = (seg[:, None, :] == seg_ids).astype(jnp.float32).astype(jnp.bfloat16)
        acc[...] += jnp.einsum('nsp,npw->nsw', sel, w,
                               preferred_element_type=jnp.float32)
        return carry

    lax.fori_loop(0, n_sub, body, 0, unroll=True)

    @pl.when(c == pl.num_programs(2) - 1)
    def _finish():
        parts = acc[...]                                          # (tile_n, NSEG_PAD, WINDOW)
        h = jnp.zeros((tile_n, bins), jnp.float32)
        for k in range(NSEG):                                     # place segments at 0/64/128
            pre = k * SEG_STRIDE
            post = bins - pre - WINDOW
            seg_h = parts[:, k, :]
            if pre:
                seg_h = jnp.concatenate(
                    [jnp.zeros((tile_n, pre), jnp.float32), seg_h], axis=-1)
            if post:
                seg_h = jnp.concatenate(
                    [seg_h, jnp.zeros((tile_n, post), jnp.float32)], axis=-1)
            h = h + seg_h
        h_ref[0, :, :] = h


def _multi_tensorcore():
    """Rough 'does one JAX device hold >=2 TensorCores' check (v4/v5p megacore, v7x)."""
    try:
        kind = jax.devices()[0].device_kind.lower()
    except Exception:
        return False
    return any(tag in kind for tag in ("v4", "v5p", "7"))


def _choose_tiling(per_part):
    sub_p = min(per_part, SUB_P)
    while per_part % sub_p:
        sub_p -= 128                     # stays a multiple of 128 (lane axis)
    dma_p = min(per_part, MAX_DMA_P)
    while per_part % dma_p or dma_p % sub_p:
        dma_p -= sub_p
    return dma_p, sub_p, per_part // dma_p


def _vmem_limit_bytes(dma_p, sub_p, bins):
    in_b = 2 * TILE_N * dma_p * 4                # input, double-buffered
    out_b = 2 * TILE_N * bins * 4                # output, double-buffered
    scr_b = TILE_N * NSEG_PAD * WINDOW * 4       # histogram accumulator
    tmp_b = 4 * TILE_N * sub_p * WINDOW * 4      # live (TILE_N, sub_p, WINDOW) temps
    return min(in_b + out_b + scr_b + tmp_b + (8 << 20), 32 << 20)  # never 64 MiB (v7x)


def pixel_distribution_loss_kl(target, prediction, *, bins=BINS, sigma=SIGMA):
    """Equivalent of PixelDistributionLoss(loss_type='kl')(target, prediction)."""
    assert target.shape == prediction.shape
    B, C, H, W = target.shape
    N, P = B * C, H * W
    NT = 2 * N                                    # target rows then prediction rows
    assert NT % TILE_N == 0, "2*B*C must be a multiple of 8"
    assert P % 128 == 0, "H*W must be a multiple of 128 (lane axis)"
    assert bins >= WINDOW and (bins - WINDOW) % SEG_STRIDE == 0, "unsupported bin count"
    # windowed evaluation is exact (to f32) only if the gaussian dies inside the margin
    assert (WINDOW - SEG_STRIDE) // 2 >= 8.0 * sigma * (bins - 1), "sigma too large for window"

    x = jnp.concatenate(
        [target.reshape(N, P), prediction.reshape(N, P)], axis=0
    ).astype(jnp.float32)

    row_tiles = NT // TILE_N
    # only split pixels across a partition axis when the row axis can't feed 2 TCs
    nparts = 2 if (_multi_tensorcore() and row_tiles < 2 and P % 256 == 0) else 1
    dma_p, sub_p, chunks = _choose_tiling(P // nparts)

    kernel = functools.partial(_soft_hist_kernel, sigma=float(sigma), bins=bins, sub_p=sub_p)

    h_parts = pl.pallas_call(
        kernel,
        out_shape=jax.ShapeDtypeStruct((nparts, NT, bins), jnp.float32),
        grid_spec=pltpu.PrefetchScalarGridSpec(
            num_scalar_prefetch=0,
            grid=(row_tiles, nparts, chunks),
            in_specs=[
                pl.BlockSpec((TILE_N, dma_p), lambda i, s, j: (i, s * chunks + j)),
            ],
            out_specs=pl.BlockSpec((1, TILE_N, bins), lambda i, s, j: (s, i, 0)),
            scratch_shapes=[
                pltpu.VMEM((TILE_N, NSEG_PAD, WINDOW), jnp.float32),
            ],
        ),
        compiler_params=pltpu.CompilerParams(
            dimension_semantics=("parallel", "parallel", "arbitrary"),
            vmem_limit_bytes=_vmem_limit_bytes(dma_p, sub_p, bins),
        ),
    )(x)

    # Tiny finalize on (2N, bins): merge partition partials, normalize, KL, mean.
    h = h_parts.sum(axis=0)
    h = h / (h.sum(axis=-1, keepdims=True) + 1e-10)
    th, ph = h[:N], h[N:]
    eps = 1e-10
    pp, qq = th + eps, ph + eps
    kl = jnp.sum(pp * jnp.log(pp / qq), axis=-1)      # per (b, c) row
    return jnp.mean(kl)


def _reference_loss(target, prediction, *, bins=BINS, sigma=SIGMA):
    """Pure-JAX port of the PyTorch module (for validation)."""
    def soft_histogram(x):
        B, C, H, W = x.shape
        centers = jnp.linspace(0.0, 1.0, bins, dtype=jnp.float32)
        xf = x.reshape(B, C, H * W, 1).astype(jnp.float32)
        diff = xf - centers.reshape(1, 1, 1, bins)
        w = jnp.exp(-0.5 * (diff / sigma) ** 2) / (sigma * math.sqrt(2 * math.pi))
        h = w.sum(axis=2)
        return h / (h.sum(axis=-1, keepdims=True) + 1e-10)

    th = soft_histogram(target)
    ph = soft_histogram(prediction)
    eps = 1e-10
    pp, qq = th + eps, ph + eps
    kl = jnp.sum(pp * jnp.log(pp / qq), axis=-1)
    return jnp.mean(kl)


if __name__ == "__main__":
    key = jax.random.PRNGKey(0)
    k1, k2 = jax.random.split(key)
    B, C, H, W = 2, 4, 16, 16                 # small (B, C, H, W) image-like inputs
    target = jax.random.uniform(k1, (B, C, H, W), dtype=jnp.float32)
    prediction = jax.random.uniform(k2, (B, C, H, W), dtype=jnp.float32)

    loss = jax.block_until_ready(pixel_distribution_loss_kl(target, prediction))
    ref = jax.block_until_ready(_reference_loss(target, prediction))

    assert jnp.isfinite(loss), "kernel produced non-finite loss"
    assert jnp.allclose(loss, ref, rtol=2e-2, atol=1e-3), (loss, ref)
    print("KERNEL_OK")
</pallas_src>

<mosaic_0001>
module attributes {stable_mosaic.version = 11 : i64} {
  func.func @_soft_hist_kernel(%arg0: i32, %arg1: i32, %arg2: i32, %arg3: memref<8x256xf32, #tpu.memory_space<vmem>>, %arg4: memref<1x8x256xf32, #tpu.memory_space<vmem>>, %arg5: memref<8x8x128xf32, #tpu.memory_space<vmem>>) attributes {dimension_semantics = [#tpu.dimension_semantics<parallel>, #tpu.dimension_semantics<parallel>, #tpu.dimension_semantics<arbitrary>], iteration_bounds = array<i64: 2, 1, 1>, scalar_prefetch = 0 : i64, scratch_operands = 1 : i64, tpu.core_type = #tpu.core_type<tc>, window_params = [{transform_indices = @transform_0, window_bounds = array<i64: 8, 256>}, {transform_indices = @transform_1, window_bounds = array<i64: 1, 8, 256>}]} {
    %c0_i32 = arith.constant 0 : i32
    %0 = arith.cmpi eq, %arg2, %c0_i32 : i32
    %1 = arith.extui %0 : i1 to i32
    %c0_i32_0 = arith.constant 0 : i32
    %2 = arith.cmpi ne, %1, %c0_i32_0 : i32
    scf.if %2 {
      %cst_17 = arith.constant 0.000000e+00 : f32
      %48 = vector.broadcast %cst_17 : f32 to vector<8x8x128xf32>
      %c0_18 = arith.constant 0 : index
      %c0_19 = arith.constant 0 : index
      %c0_20 = arith.constant 0 : index
      %49 = vector.load %arg5[%c0_18, %c0_19, %c0_20] : memref<8x8x128xf32, #tpu.memory_space<vmem>>, vector<8x8x128xf32>
      tpu.vector_store %arg5[%c0_18, %c0_19, %c0_20], %48 {strides = array<i32>} : memref<8x8x128xf32, #tpu.memory_space<vmem>>, vector<8x8x128xf32>,
    } else {
    }
    %3 = tpu.iota {dimensions = array<i32: 2>} : vector<1x1x128xi32>
    %4 = arith.sitofp %3 : vector<1x1x128xi32> to vector<1x1x128xf32>
    %5 = tpu.iota {dimensions = array<i32: 1>} : vector<1x8x1xi32>
    %6 = arith.sitofp %5 : vector<1x8x1xi32> to vector<1x8x1xf32>
    %c0_i32_1 = arith.constant 0 : i32
    %c256_i32 = arith.constant 256 : i32
    %7 = arith.muli %c0_i32_1, %c256_i32 : i32
    %8 = tpu.assume_multiple %7, 128 : i32
    %c0 = arith.constant 0 : index
    %9 = arith.index_cast %8 : i32 to index
    %10 = vector.load %arg3[%c0, %9] : memref<8x256xf32, #tpu.memory_space<vmem>>, vector<8x256xf32>
    %cst = arith.constant 2.550000e+02 : f32
    %11 = vector.broadcast %cst : f32 to vector<8x256xf32>
    %12 = arith.mulf %10, %11 : vector<8x256xf32>
    %cst_2 = arith.constant 3.200000e+01 : f32
    %13 = vector.broadcast %cst_2 : f32 to vector<8x256xf32>
    %14 = arith.subf %12, %13 : vector<8x256xf32>
    %cst_3 = arith.constant 1.562500e-02 : f32
    %15 = vector.broadcast %cst_3 : f32 to vector<8x256xf32>
    %16 = arith.mulf %14, %15 : vector<8x256xf32>
    %17 = math.floor %16 : vector<8x256xf32>
    %cst_4 = arith.constant 0.000000e+00 : f32
    %cst_5 = arith.constant 2.000000e+00 : f32
    %18 = vector.broadcast %cst_4 : f32 to vector<8x256xf32>
    %19 = arith.maximumf %18, %17 : vector<8x256xf32>
    %20 = vector.broadcast %cst_5 : f32 to vector<8x256xf32>
    %21 = arith.minimumf %20, %19 : vector<8x256xf32>
    %cst_6 = arith.constant 6.400000e+01 : f32
    %22 = vector.broadcast %cst_6 : f32 to vector<8x256xf32>
    %23 = arith.mulf %21, %22 : vector<8x256xf32>
    %24 = arith.subf %12, %23 : vector<8x256xf32>
    %25 = vector.shape_cast %24 : vector<8x256xf32> to vector<8x256x1xf32>
    %26 = vector.broadcast %25 : vector<8x256x1xf32> to vector<8x256x128xf32>
    %27 = vector.broadcast %4 : vector<1x1x128xf32> to vector<8x256x128xf32>
    %28 = arith.subf %26, %27 : vector<8x256x128xf32>
    %29 = arith.mulf %28, %28 : vector<8x256x128xf32>
    %cst_7 = arith.constant -7.689350e-02 : f32
    %30 = vector.broadcast %cst_7 : f32 to vector<8x256x128xf32>
    %31 = arith.mulf %30, %29 : vector<8x256x128xf32>
    %32 = math.exp %31 : vector<8x256x128xf32>
    %33 = arith.truncf %32 : vector<8x256x128xf32> to vector<8x256x128xbf16>
    %34 = vector.shape_cast %21 : vector<8x256xf32> to vector<8x1x256xf32>
    %35 = vector.broadcast %34 : vector<8x1x256xf32> to vector<8x8x256xf32>
    %36 = vector.broadcast %6 : vector<1x8x1xf32> to vector<8x8x256xf32>
    %37 = arith.cmpf oeq, %35, %36 : vector<8x8x256xf32>
    %38 = arith.extui %37 : vector<8x8x256xi1> to vector<8x8x256xi32>
    %39 = arith.sitofp %38 : vector<8x8x256xi32> to vector<8x8x256xf32>
    %40 = arith.truncf %39 : vector<8x8x256xf32> to vector<8x8x256xbf16>
    %c0_8 = arith.constant 0 : index
    %c0_9 = arith.constant 0 : index
    %c0_10 = arith.constant 0 : index
    %41 = vector.load %arg5[%c0_8, %c0_9, %c0_10] : memref<8x8x128xf32, #tpu.memory_space<vmem>>, vector<8x8x128xf32>
    "tpu.trace_start"() <{level = 10 : i32, message = "nsp,npw->nsw"}> : () -> ()
    %cst_11 = arith.constant dense<0.000000e+00> : vector<8x8x128xf32>
    %42 = tpu.matmul %40, %33, %cst_11 {dimension_numbers = #tpu.dot_dimension_numbers<[2], [1], [1], [2], [0, 0, 0, 1, 1, 2], [0], [0]>} : vector<8x8x256xbf16>, vector<8x256x128xbf16>, vector<8x8x128xf32> -> vector<8x8x128xf32>
    "tpu.trace_stop"() : () -> ()
    %43 = arith.addf %41, %42 : vector<8x8x128xf32>
    %c0_12 = arith.constant 0 : index
    %c0_13 = arith.constant 0 : index
    %c0_14 = arith.constant 0 : index
    %44 = vector.load %arg5[%c0_12, %c0_13, %c0_14] : memref<8x8x128xf32, #tpu.memory_space<vmem>>, vector<8x8x128xf32>
    tpu.vector_store %arg5[%c0_12, %c0_13, %c0_14], %43 {strides = array<i32>} : memref<8x8x128xf32, #tpu.memory_space<vmem>>, vector<8x8x128xf32>,
    %c1_i32 = arith.constant 1 : i32
    %c0_i32_15 = arith.constant 0 : i32
    %45 = arith.cmpi eq, %arg2, %c0_i32_15 : i32
    %46 = arith.extui %45 : i1 to i32
    %c0_i32_16 = arith.constant 0 : i32
    %47 = arith.cmpi ne, %46, %c0_i32_16 : i32
    scf.if %47 {
      %c0_17 = arith.constant 0 : index
      %c0_18 = arith.constant 0 : index
      %c0_19 = arith.constant 0 : index
      %48 = vector.load %arg5[%c0_17, %c0_18, %c0_19] : memref<8x8x128xf32, #tpu.memory_space<vmem>>, vector<8x8x128xf32>
      %cst_20 = arith.constant 0.000000e+00 : f32
      %49 = vector.broadcast %cst_20 : f32 to vector<8x256xf32>
      %50 = vector.extract_strided_slice %48 {offsets = [0, 0, 0], sizes = [8, 1, 128], strides = [1, 1, 1]} : vector<8x8x128xf32> to vector<8x1x128xf32>
      %51 = vector.shape_cast %50 : vector<8x1x128xf32> to vector<8x128xf32>
      %cst_21 = arith.constant 0.000000e+00 : f32
      %52 = vector.broadcast %cst_21 : f32 to vector<8x128xf32>
      %53 = tpu.concatenate %51, %52 in 1 : vector<8x128xf32>, vector<8x128xf32> -> vector<8x256xf32>
      %54 = arith.addf %49, %53 : vector<8x256xf32>
      %55 = vector.extract_strided_slice %48 {offsets = [0, 1, 0], sizes = [8, 1, 128], strides = [1, 1, 1]} : vector<8x8x128xf32> to vector<8x1x128xf32>
      %56 = vector.shape_cast %55 : vector<8x1x128xf32> to vector<8x128xf32>
      %cst_22 = arith.constant 0.000000e+00 : f32
      %57 = vector.broadcast %cst_22 : f32 to vector<8x64xf32>
      %58 = tpu.concatenate %57, %56 in 1 : vector<8x64xf32>, vector<8x128xf32> -> vector<8x192xf32>
      %cst_23 = arith.constant 0.000000e+00 : f32
      %59 = vector.broadcast %cst_23 : f32 to vector<8x64xf32>
      %60 = tpu.concatenate %58, %59 in 1 : vector<8x192xf32>, vector<8x64xf32> -> vector<8x256xf32>
      %61 = arith.addf %54, %60 : vector<8x256xf32>
      %62 = vector.extract_strided_slice %48 {offsets = [0, 2, 0], sizes = [8, 1, 128], strides = [1, 1, 1]} : vector<8x8x128xf32> to vector<8x1x128xf32>
      %63 = vector.shape_cast %62 : vector<8x1x128xf32> to vector<8x128xf32>
      %cst_24 = arith.constant 0.000000e+00 : f32
      %64 = vector.broadcast %cst_24 : f32 to vector<8x128xf32>
      %65 = tpu.concatenate %64, %63 in 1 : vector<8x128xf32>, vector<8x128xf32> -> vector<8x256xf32>
      %66 = arith.addf %61, %65 : vector<8x256xf32>
      %c0_25 = arith.constant 0 : index
      %c0_26 = arith.constant 0 : index
      %c0_27 = arith.constant 0 : index
      %67 = vector.load %arg4[%c0_25, %c0_26, %c0_27] : memref<1x8x256xf32, #tpu.memory_space<vmem>>, vector<1x8x256xf32>
      %68 = vector.shape_cast %67 : vector<1x8x256xf32> to vector<8x256xf32>
      %69 = vector.shape_cast %66 : vector<8x256xf32> to vector<1x8x256xf32>
      tpu.vector_store %arg4[%c0_25, %c0_26, %c0_27], %69 {strides = array<i32>} : memref<1x8x256xf32, #tpu.memory_space<vmem>>, vector<1x8x256xf32>,
    } else {
    }
    return
  }
  func.func @transform_0(%arg0: i32, %arg1: i32, %arg2: i32) -> (i32, i32) {
    %c1_i32 = arith.constant 1 : i32
    %0 = arith.muli %arg1, %c1_i32 : i32
    %1 = arith.addi %0, %arg2 : i32
    %c0_i32 = arith.constant 0 : i32
    return %arg0, %1 : i32, i32
  }
  func.func @transform_1(%arg0: i32, %arg1: i32, %arg2: i32) -> (i32, i32, i32) {
    %c0_i32 = arith.constant 0 : i32
    %c0_i32_0 = arith.constant 0 : i32
    return %arg1, %arg0, %c0_i32 : i32, i32, i32
  }
}

</mosaic_0001>

<llo_original>
// kernel: tpu_custom_call.1
$region0: #{tpu_custom_call.1}
  #allocation0 [shape = 'u32[]', space=smem, size = 0x4, offset = 0x4, fixed_abs, tag = 'smem constant byte address 0x4 - core index']
  #allocation1 [shape = 'u32[144,128]{1,0:T(1,128)}', space=vmem, size = 0x12000, scoped, tag = 'internal scratch']
  #allocation2 [shape = 'f32[8,8,128]{2,1,0:T(8,128)}', space=vmem, size = 0x8000, scoped, tag = 'scratch operand']
  %s0 = inlined_call_operand.hbm [shape: f32[16,256], index: 0, kind: input, shape index: {}]
  %s1 = inlined_call_operand.hbm [shape: f32[1,16,256], index: 1, kind: output, shape index: {}]
  %s2 = sld [smem:[#allocation0]]
  $region49: #{tpu_custom_call.1} parent=0
    _
  %s4 = ssub.s32 1, %s2
  %s5 = scalar_select 0, %s4, %s2
  $region1: #{tpu_custom_call.1} parent=0
    #allocation3 [shape = 'u8[16384]{0}', space=vmem, size = 0x4000, scoped, tag = 'input window, operand 0']
    #allocation4 [shape = 's32[2]{0}', space=sflag, size = 0x8, scoped, tag = 'scoped memory for tpu_custom_call.1']
    #allocation5 [shape = 's32[2]{0}', space=sflag, size = 0x8, scoped, tag = 'scoped memory for tpu_custom_call.1']
    #allocation6 [shape = 'u8[16384]{0}', space=vmem, size = 0x4000, scoped, tag = 'output window, operand 0']
    %6 = vsyncpa [#allocation4], 0
    %s7 = scalar_lea.sflag [#allocation4], 1
    %8 = vsyncpa %s7, 0
    %9 = vsyncpa [#allocation5], 0
    %s10 = scalar_lea.sflag [#allocation5], 1
    %11 = vsyncpa %s10, 0
    loop: start=0, step=1, limit=4
    $region2: #{tpu_custom_call.1} parent=1 // loop_pre_header
      _
    $region3: #{tpu_custom_call.1} parent=1 // loop_header
      %s13 = sphi 0, %s17
      %p14 = scmp.ge.s32.totalorder %s13, 4
      %s20 = sphi 0, %s39
      %s21 = sphi 0, %s35
      %s22 = sphi 0, %s31
      %s23 = sphi 0, %s20
      %s24 = sphi 0, %s21
      %s25 = sphi 0, %s22
      %s26 = sphi 0, %s23
      %s27 = sphi 0, %s24
      %s28 = sphi 0, %s25
      %s46 = sphi 0, %s48
      %s49 = sphi 0, %s46
      %s50 = sphi 0, %s49
      %s66 = sphi 0, %s50
      %s74 = sphi 0, %s76
      %s77 = sphi 0, %s74
      %s78 = sphi 0, %s77
      %s94 = sphi 0, %s78
    $region4: #{tpu_custom_call.1} parent=1 // loop_header_branch
      %16 = sbr.rel (%p14) target = $region8
    $region5: #{tpu_custom_call.1} parent=1 // loop_body
      %s18 = ssub.s32 %s13, 1
      %s19 = ssub.s32 %s13, 2
      %s29 = sadd.s32 1, %s22
      %p30 = scmp.ge.s32.totalorder %s29, 1
      %s31 = scalar_select %p30, 0, %s29
      %s32 = sadd.s32 1, %s21
      %s33 = scalar_select %p30, %s32, %s21
      %p34 = scmp.ge.s32.totalorder %s33, 1
      %s35 = scalar_select %p34, 0, %s33
      %s36 = sadd.s32 1, %s20
      %s37 = scalar_select %p34, %s36, %s20
      %p38 = scmp.ge.s32.totalorder %s37, 2
      %s39 = scalar_select %p38, 0, %s37
      %s40 = sadd.s32 %s21, %s22
      %s41 = sadd.s32 %s35, %s31
      %s42 = ssub.s32 %s20, %s39
      %s43 = ssub.s32 %s40, %s41
      %s44 = sor.u32 %s42, %s43
      %p45 = scmp.eq.s32.totalorder %s44, 0
      %s47 = sadd.s32 %s46, 1
      %s48 = scalar_select %p45, %s46, %s47
      %p51 = pneg %p45
      %p52 = scmp.eq.s32.totalorder %s13, 1
      %p53 = por %p51, %p52
      %p54 = scmp.ne.s32.totalorder %s46, %s49
      %p55 = scmp.eq.s32.totalorder %s13, 0
      %p56 = por %p54, %p55
      %p57 = scmp.ne.s32.totalorder %s46, %s49
      %p58 = scmp.eq.s32.totalorder %s18, 1
      %p59 = por %p57, %p58
      %p60 = scmp.ne.s32.totalorder %s49, %s50
      %p61 = scmp.eq.s32.totalorder %s18, 0
      %p62 = por %p60, %p61
      %p63 = scmp.ne.s32.totalorder %s49, %s50
      %p64 = scmp.eq.s32.totalorder %s19, 1
      %p65 = por %p63, %p64
      %p67 = scmp.ne.s32.totalorder %s50, %s66
      %p68 = scmp.eq.s32.totalorder %s19, 0
      %p69 = por %p67, %p68
      %s70 = ssub.s32 %s21, %s35
      %s71 = ssub.s32 %s20, %s39
      %s72 = sor.u32 %s70, %s71
      %p73 = scmp.eq.s32.totalorder %s72, 0
      %s75 = sadd.s32 %s74, 1
      %s76 = scalar_select %p73, %s74, %s75
      %p79 = pneg %p73
      %p80 = scmp.eq.s32.totalorder %s13, 1
      %p81 = por %p79, %p80
      %p82 = scmp.ne.s32.totalorder %s74, %s77
      %p83 = scmp.eq.s32.totalorder %s13, 0
      %p84 = por %p82, %p83
      %p85 = scmp.ne.s32.totalorder %s74, %s77
      %p86 = scmp.eq.s32.totalorder %s18, 1
      %p87 = por %p85, %p86
      %p88 = scmp.ne.s32.totalorder %s77, %s78
      %p89 = scmp.eq.s32.totalorder %s18, 0
      %p90 = por %p88, %p89
      %p91 = scmp.ne.s32.totalorder %s77, %s78
      %p92 = scmp.eq.s32.totalorder %s19, 1
      %p93 = por %p91, %p92
      %p95 = scmp.ne.s32.totalorder %s78, %s94
      %p96 = scmp.eq.s32.totalorder %s19, 0
      %p97 = por %p95, %p96
      %p98 = scmp.le.s32.totalorder 1, %s13
      %p99 = scmp.lt.s32.totalorder %s13, 3
      %p100 = pnand %p98, %p99
      %p101 = pneg %p100
      // Predicated region
      $region9: #{tpu_custom_call.1} parent=5 // pred_check
        _
      $region10: #{tpu_custom_call.1} parent=5 // pred_check_branch
        %103 = sbr.rel (%p100) target = $region12
      $region11: #{tpu_custom_call.1} parent=5 // pred_region
        %s104 = ssub.s32 %s13, 1
      $region12: #{tpu_custom_call.1} parent=5 // pred_fallthru
        _
      %p105 = scmp.lt.s32.totalorder %s13, 2
      // Predicated region
      $region13: #{tpu_custom_call.1} parent=5 // pred_check
        %p106 = pneg %p105
      $region14: #{tpu_custom_call.1} parent=5 // pred_check_branch
        %108 = sbr.rel (%p106) target = $region16
      $region15: #{tpu_custom_call.1} parent=5 // pred_region
        // Predicated region
        $region17: #{tpu_custom_call.1} parent=15 // pred_check
          %p109 = pneg %p56
        $region18: #{tpu_custom_call.1} parent=15 // pred_check_branch
          %111 = sbr.rel (%p109) target = $region20
        $region19: #{tpu_custom_call.1} parent=15 // pred_region
          %s112 = sand.u32 %s46, 1
          %s113 = scalar_lea.sflag [#allocation4], %s112
          %s114 = sand.u32 %s46, 1
          %s115 = smul.addr %s114, 16
          %s116 = scalar_lea.vmem [#allocation3], %s115
          %s117 = sadd.s32 %s21, %s22
          %s118 = smul.u32 2, %s117
          %s120 = ssub.s32 256, 256
          %121 = vsyncadd %s113, %s120
          %s122 = smul.addr %s20, 2
          %s123 = sadd.s32 %s118, %s122
          %s124 = smul.addr %s123, 128
          %s125 = scalar_lea.hbm %s0, %s124
          %s127 = sshll.u32 %s116, 4
          %s128 = int_to_ptr.vmem [resolvable:$true] %s127
          %130 = dma.hbm_to_vmem [thread:$0]  %s125, 256, %s128, %s113
        $region20: #{tpu_custom_call.1} parent=15 // pred_fallthru
          _
      $region16: #{tpu_custom_call.1} parent=5 // pred_fallthru
        _
      %p131 = scmp.le.s32.totalorder 1, %s13
      %p132 = scmp.lt.s32.totalorder %s13, 3
      %p133 = pnand %p131, %p132
      %p134 = pneg %p133
      // Predicated region
      $region21: #{tpu_custom_call.1} parent=5 // pred_check
        _
      $region22: #{tpu_custom_call.1} parent=5 // pred_check_branch
        %136 = sbr.rel (%p133) target = $region24
      $region23: #{tpu_custom_call.1} parent=5 // pred_region
        %s137 = ssub.s32 %s13, 1
        %s138 = sand.u32 %s49, 1
        %s139 = scalar_lea.sflag [#allocation4], %s138
        %s140 = sand.u32 %s49, 1
        %s141 = smul.addr %s140, 16
        %s142 = scalar_lea.vmem [#allocation3], %s141
        // Predicated region
        $region25: #{tpu_custom_call.1} parent=23 // pred_check
          %p143 = pneg %p62
        $region26: #{tpu_custom_call.1} parent=23 // pred_check_branch
          %145 = sbr.rel (%p143) target = $region28
        $region27: #{tpu_custom_call.1} parent=23 // pred_region
          %146 = dma.done %s139, 256
        $region28: #{tpu_custom_call.1} parent=23 // pred_fallthru
          _
        %s147 = sand.u32 %s49, 1
        %s148 = scalar_lea.sflag [#allocation4], %s147
        %s149 = sand.u32 %s49, 1
        %s150 = smul.addr %s149, 16
        %s151 = scalar_lea.vmem [#allocation3], %s150
        %p152 = pneg %p62
        %p153 = pneg %p59
        %p154 = pneg %p90
        %p155 = pneg %p87
        %s156 = sand.u32 %s77, 1
        %s157 = scalar_lea.sflag [#allocation5], %s156
        %s158 = sand.u32 %s77, 1
        %s159 = smul.addr %s158, 16
        %s160 = scalar_lea.vmem [#allocation6], %s159
        %s161 = sadd.s32 %s24, %s25
        %s162 = smul.u32 2, %s161
        %p164 = scmp.eq.s32.totalorder %s25, 0
        // Predicated region
        $region29: #{tpu_custom_call.1} parent=23 // pred_check
          %p165 = pneg %p164
        $region30: #{tpu_custom_call.1} parent=23 // pred_check_branch
          %167 = sbr.rel (%p165) target = $region32
        $region31: #{tpu_custom_call.1} parent=23 // pred_region
          %168 = vst [vmem:[#allocation2] sm:$0xff] 0.0
          %169 = vst [vmem:[#allocation2 + $0x8] sm:$0xff] 0.0
          %170 = vst [vmem:[#allocation2 + $0x10] sm:$0xff] 0.0
          %171 = vst [vmem:[#allocation2 + $0x18] sm:$0xff] 0.0
          %172 = vst [vmem:[#allocation2 + $0x20] sm:$0xff] 0.0
          %173 = vst [vmem:[#allocation2 + $0x28] sm:$0xff] 0.0
          %174 = vst [vmem:[#allocation2 + $0x30] sm:$0xff] 0.0
          %175 = vst [vmem:[#allocation2 + $0x38] sm:$0xff] 0.0
        $region32: #{tpu_custom_call.1} parent=23 // pred_fallthru
          _
        %v176 = vlaneseq
        %v177 = vand.u32 %v176, 127
        %v178 = vcvt.s32.f32 %v177
        %v179 = vlaneseq
        %v180 = vshrl.u32 %v179, 7
        %v181 = vcvt.s32.f32 %v180
        %v182 = vld [vmem:[%s142] sm:$0xff]
        %v183 = vld [vmem:[%s142 + $0x8] sm:$0xff]
        %v184 = vmul.f32 %v182, 255.0
        %v185 = vmul.f32 %v183, 255.0
        %v186 = vsub.f32 %v184, 32.0
        %v187 = vsub.f32 %v185, 32.0
        %v188 = vmul.f32 %v186, 0.015625
        %v189 = vmul.f32 %v187, 0.015625
        %v190 = vfloor.f32 %v188
        %v191 = vfloor.f32 %v189
        %v192 = vmax.f32 %v190, 0.0
        %v193 = vmax.f32 %v191, 0.0
        %v194 = vmin.f32 %v192, 2.0
        %v195 = vmin.f32 %v193, 2.0
        %v196 = vmul.f32 %v194, 64.0
        %v197 = vmul.f32 %v195, 64.0
        %v198 = vsub.f32 %v184, %v196
        %v199 = vsub.f32 %v185, %v197
        %v200 = vlaneseq
        %v201 = vshrl.u32 %v200, 7
        %v202 = vsub.s32 0, %v201
        %v203 = vrot.slane %v198, %v202
        %205 = vbcast.lane.b32.xlu0 %v203, 256
        %v206 = vpop.permute.xlu0 %205
        %s208 = sor.u32 256, 8
        %209 = vbcast.lane.b32.xlu0 %v203, %s208
        %v210 = vpop.permute.xlu0 %209
        %s212 = sor.u32 256, 16
        %213 = vbcast.lane.b32.xlu0 %v203, %s212
        %v214 = vpop.permute.xlu0 %213
        %s216 = sor.u32 256, 24
        %217 = vbcast.lane.b32.xlu0 %v203, %s216
        %v218 = vpop.permute.xlu0 %217
        %s220 = sor.u32 256, 32
        %221 = vbcast.lane.b32.xlu0 %v203, %s220
        %v222 = vpop.permute.xlu0 %221
        %s224 = sor.u32 256, 40
        %225 = vbcast.lane.b32.xlu0 %v203, %s224
        %v226 = vpop.permute.xlu0 %225
        %s228 = sor.u32 256, 48
        %229 = vbcast.lane.b32.xlu0 %v203, %s228
        %v230 = vpop.permute.xlu0 %229
        %s232 = sor.u32 256, 56
        %233 = vbcast.lane.b32.xlu0 %v203, %s232
        %v234 = vpop.permute.xlu0 %233
        %s236 = sor.u32 256, 64
        %237 = vbcast.lane.b32.xlu0 %v203, %s236
        %v238 = vpop.permute.xlu0 %237
        %s240 = sor.u32 256, 72
        %241 = vbcast.lane.b32.xlu0 %v203, %s240
        %v242 = vpop.permute.xlu0 %241
        %s244 = sor.u32 256, 80
        %245 = vbcast.lane.b32.xlu0 %v203, %s244
        %v246 = vpop.permute.xlu0 %245
        %s248 = sor.u32 256, 88
        %249 = vbcast.lane.b32.xlu0 %v203, %s248
        %v250 = vpop.permute.xlu0 %249
        %s252 = sor.u32 256, 96
        %253 = vbcast.lane.b32.xlu0 %v203, %s252
        %v254 = vpop.permute.xlu0 %253
        %s256 = sor.u32 256, 104
        %257 = vbcast.lane.b32.xlu0 %v203, %s256
        %v258 = vpop.permute.xlu0 %257
        %s260 = sor.u32 256, 112
        %261 = vbcast.lane.b32.xlu0 %v203, %s260
        %v262 = vpop.permute.xlu0 %261
        %s264 = sor.u32 256, 120
        %265 = vbcast.lane.b32.xlu0 %v203, %s264
        %v266 = vpop.permute.xlu0 %265
        %v267 = vlaneseq
        %v268 = vshrl.u32 %v267, 7
        %v269 = vsub.s32 0, %v268
        %v270 = vrot.slane %v199, %v269
        %272 = vbcast.lane.b32.xlu0 %v270, 256
        %v273 = vpop.permute.xlu0 %272
        %s275 = sor.u32 256, 8
        %276 = vbcast.lane.b32.xlu0 %v270, %s275
        %v277 = vpop.permute.xlu0 %276
        %s279 = sor.u32 256, 16
        %280 = vbcast.lane.b32.xlu0 %v270, %s279
        %v281 = vpop.permute.xlu0 %280
        %s283 = sor.u32 256, 24
        %284 = vbcast.lane.b32.xlu0 %v270, %s283
        %v285 = vpop.permute.xlu0 %284
        %s287 = sor.u32 256, 32
        %288 = vbcast.lane.b32.xlu0 %v270, %s287
        %v289 = vpop.permute.xlu0 %288
        %s291 = sor.u32 256, 40
        %292 = vbcast.lane.b32.xlu0 %v270, %s291
        %v293 = vpop.permute.xlu0 %292
        %s295 = sor.u32 256, 48
        %296 = vbcast.lane.b32.xlu0 %v270, %s295
        %v297 = vpop.permute.xlu0 %296
        %s299 = sor.u32 256, 56
        %300 = vbcast.lane.b32.xlu0 %v270, %s299
        %v301 = vpop.permute.xlu0 %300
        %s303 = sor.u32 256, 64
        %304 = vbcast.lane.b32.xlu0 %v270, %s303
        %v305 = vpop.permute.xlu0 %304
        %s307 = sor.u32 256, 72
        %308 = vbcast.lane.b32.xlu0 %v270, %s307
        %v309 = vpop.permute.xlu0 %308
        %s311 = sor.u32 256, 80
        %312 = vbcast.lane.b32.xlu0 %v270, %s311
        %v313 = vpop.permute.xlu0 %312
        %s315 = sor.u32 256, 88
        %316 = vbcast.lane.b32.xlu0 %v270, %s315
        %v317 = vpop.permute.xlu0 %316
        %s319 = sor.u32 256, 96
        %320 = vbcast.lane.b32.xlu0 %v270, %s319
        %v321 = vpop.permute.xlu0 %320
        %s323 = sor.u32 256, 104
        %324 = vbcast.lane.b32.xlu0 %v270, %s323
        %v325 = vpop.permute.xlu0 %324
        %s327 = sor.u32 256, 112
        %328 = vbcast.lane.b32.xlu0 %v270, %s327
        %v329 = vpop.permute.xlu0 %328
        %s331 = sor.u32 256, 120
        %332 = vbcast.lane.b32.xlu0 %v270, %s331
        %v333 = vpop.permute.xlu0 %332
        %v334 = vlaneseq
        %v335 = vshrl.u32 %v334, 7
        %v336 = vsub.s32 1, %v335
        %v337 = vrot.slane %v198, %v336
        %339 = vbcast.lane.b32.xlu0 %v337, 256
        %v340 = vpop.permute.xlu0 %339
        %s342 = sor.u32 256, 8
        %343 = vbcast.lane.b32.xlu0 %v337, %s342
        %v344 = vpop.permute.xlu0 %343
        %s346 = sor.u32 256, 16
        %347 = vbcast.lane.b32.xlu0 %v337, %s346
        %v348 = vpop.permute.xlu0 %347
        %s350 = sor.u32 256, 24
        %351 = vbcast.lane.b32.xlu0 %v337, %s350
        %v352 = vpop.permute.xlu0 %351
        %s354 = sor.u32 256, 32
        %355 = vbcast.lane.b32.xlu0 %v337, %s354
        %v356 = vpop.permute.xlu0 %355
        %s358 = sor.u32 256, 40
        %359 = vbcast.lane.b32.xlu0 %v337, %s358
        %v360 = vpop.permute.xlu0 %359
        %s362 = sor.u32 256, 48
        %363 = vbcast.lane.b32.xlu0 %v337, %s362
        %v364 = vpop.permute.xlu0 %363
        %s366 = sor.u32 256, 56
        %367 = vbcast.lane.b32.xlu0 %v337, %s366
        %v368 = vpop.permute.xlu0 %367
        %s370 = sor.u32 256, 64
        %371 = vbcast.lane.b32.xlu0 %v337, %s370
        %v372 = vpop.permute.xlu0 %371
        %s374 = sor.u32 256, 72
        %375 = vbcast.lane.b32.xlu0 %v337, %s374
        %v376 = vpop.permute.xlu0 %375
        %s378 = sor.u32 256, 80
        %379 = vbcast.lane.b32.xlu0 %v337, %s378
        %v380 = vpop.permute.xlu0 %379
        %s382 = sor.u32 256, 88
        %383 = vbcast.lane.b32.xlu0 %v337, %s382
        %v384 = vpop.permute.xlu0 %383
        %s386 = sor.u32 256, 96
        %387 = vbcast.lane.b32.xlu0 %v337, %s386
        %v388 = vpop.permute.xlu0 %387
        %s390 = sor.u32 256, 104
        %391 = vbcast.lane.b32.xlu0 %v337, %s390
        %v392 = vpop.permute.xlu0 %391
        %s394 = sor.u32 256, 112
        %395 = vbcast.lane.b32.xlu0 %v337, %s394
        %v396 = vpop.permute.xlu0 %395
        %s398 = sor.u32 256, 120
        %399 = vbcast.lane.b32.xlu0 %v337, %s398
        %v400 = vpop.permute.xlu0 %399
        %v401 = vlaneseq
        %v402 = vshrl.u32 %v401, 7
        %v403 = vsub.s32 1, %v402
        %v404 = vrot.slane %v199, %v403
        %406 = vbcast.lane.b32.xlu0 %v404, 256
        %v407 = vpop.permute.xlu0 %406
        %s409 = sor.u32 256, 8
        %410 = vbcast.lane.b32.xlu0 %v404, %s409
        %v411 = vpop.permute.xlu0 %410
        %s413 = sor.u32 256, 16
        %414 = vbcast.lane.b32.xlu0 %v404, %s413
        %v415 = vpop.permute.xlu0 %414
        %s417 = sor.u32 256, 24
        %418 = vbcast.lane.b32.xlu0 %v404, %s417
        %v419 = vpop.permute.xlu0 %418
        %s421 = sor.u32 256, 32
        %422 = vbcast.lane.b32.xlu0 %v404, %s421
        %v423 = vpop.permute.xlu0 %422
        %s425 = sor.u32 256, 40
        %426 = vbcast.lane.b32.xlu0 %v404, %s425
        %v427 = vpop.permute.xlu0 %426
        %s429 = sor.u32 256, 48
        %430 = vbcast.lane.b32.xlu0 %v404, %s429
        %v431 = vpop.permute.xlu0 %430
        %s433 = sor.u32 256, 56
        %434 = vbcast.lane.b32.xlu0 %v404, %s433
        %v435 = vpop.permute.xlu0 %434
        %s437 = sor.u32 256, 64
        %438 = vbcast.lane.b32.xlu0 %v404, %s437
        %v439 = vpop.permute.xlu0 %438
        %s441 = sor.u32 256, 72
        %442 = vbcast.lane.b32.xlu0 %v404, %s441
        %v443 = vpop.permute.xlu0 %442
        %s445 = sor.u32 256, 80
        %446 = vbcast.lane.b32.xlu0 %v404, %s445
        %v447 = vpop.permute.xlu0 %446
        %s449 = sor.u32 256, 88
        %450 = vbcast.lane.b32.xlu0 %v404, %s449
        %v451 = vpop.permute.xlu0 %450
        %s453 = sor.u32 256, 96
        %454 = vbcast.lane.b32.xlu0 %v404, %s453
        %v455 = vpop.permute.xlu0 %454
        %s457 = sor.u32 256, 104
        %458 = vbcast.lane.b32.xlu0 %v404, %s457
        %v459 = vpop.permute.xlu0 %458
        %s461 = sor.u32 256, 112
        %462 = vbcast.lane.b32.xlu0 %v404, %s461
        %v463 = vpop.permute.xlu0 %462
        %s465 = sor.u32 256, 120
        %466 = vbcast.lane.b32.xlu0 %v404, %s465
        %v467 = vpop.permute.xlu0 %466
        %v468 = vlaneseq
        %v469 = vshrl.u32 %v468, 7
        %v470 = vsub.s32 2, %v469
        %v471 = vrot.slane %v198, %v470
        %473 = vbcast.lane.b32.xlu0 %v471, 256
        %v474 = vpop.permute.xlu0 %473
        %s476 = sor.u32 256, 8
        %477 = vbcast.lane.b32.xlu0 %v471, %s476
        %v478 = vpop.permute.xlu0 %477
        %s480 = sor.u32 256, 16
        %481 = vbcast.lane.b32.xlu0 %v471, %s480
        %v482 = vpop.permute.xlu0 %481
        %s484 = sor.u32 256, 24
        %485 = vbcast.lane.b32.xlu0 %v471, %s484
        %v486 = vpop.permute.xlu0 %485
        %s488 = sor.u32 256, 32
        %489 = vbcast.lane.b32.xlu0 %v471, %s488
        %v490 = vpop.permute.xlu0 %489
        %s492 = sor.u32 256, 40
        %493 = vbcast.lane.b32.xlu0 %v471, %s492
        %v494 = vpop.permute.xlu0 %493
        %s496 = sor.u32 256, 48
        %497 = vbcast.lane.b32.xlu0 %v471, %s496
        %v498 = vpop.permute.xlu0 %497
        %s500 = sor.u32 256, 56
        %501 = vbcast.lane.b32.xlu0 %v471, %s500
        %v502 = vpop.permute.xlu0 %501
        %s504 = sor.u32 256, 64
        %505 = vbcast.lane.b32.xlu0 %v471, %s504
        %v506 = vpop.permute.xlu0 %505
        %s508 = sor.u32 256, 72
        %509 = vbcast.lane.b32.xlu0 %v471, %s508
        %v510 = vpop.permute.xlu0 %509
        %s512 = sor.u32 256, 80
        %513 = vbcast.lane.b32.xlu0 %v471, %s512
        %v514 = vpop.permute.xlu0 %513
        %s516 = sor.u32 256, 88
        %517 = vbcast.lane.b32.xlu0 %v471, %s516
        %v518 = vpop.permute.xlu0 %517
        %s520 = sor.u32 256, 96
        %521 = vbcast.lane.b32.xlu0 %v471, %s520
        %v522 = vpop.permute.xlu0 %521
        %s524 = sor.u32 256, 104
        %525 = vbcast.lane.b32.xlu0 %v471, %s524
        %v526 = vpop.permute.xlu0 %525
        %s528 = sor.u32 256, 112
        %529 = vbcast.lane.b32.xlu0 %v471, %s528
        %v530 = vpop.permute.xlu0 %529
        %s532 = sor.u32 256, 120
        %533 = vbcast.lane.b32.xlu0 %v471, %s532
        %v534 = vpop.permute.xlu0 %533
        %v535 = vlaneseq
        %v536 = vshrl.u32 %v535, 7
        %v537 = vsub.s32 2, %v536
        %v538 = vrot.slane %v199, %v537
        %540 = vbcast.lane.b32.xlu0 %v538, 256
        %v541 = vpop.permute.xlu0 %540
        %s543 = sor.u32 256, 8
        %544 = vbcast.lane.b32.xlu0 %v538, %s543
        %v545 = vpop.permute.xlu0 %544
        %s547 = sor.u32 256, 16
        %548 = vbcast.lane.b32.xlu0 %v538, %s547
        %v549 = vpop.permute.xlu0 %548
        %s551 = sor.u32 256, 24
        %552 = vbcast.lane.b32.xlu0 %v538, %s551
        %v553 = vpop.permute.xlu0 %552
        %s555 = sor.u32 256, 32
        %556 = vbcast.lane.b32.xlu0 %v538, %s555
        %v557 = vpop.permute.xlu0 %556
        %s559 = sor.u32 256, 40
        %560 = vbcast.lane.b32.xlu0 %v538, %s559
        %v561 = vpop.permute.xlu0 %560
        %s563 = sor.u32 256, 48
        %564 = vbcast.lane.b32.xlu0 %v538, %s563
        %v565 = vpop.permute.xlu0 %564
        %s567 = sor.u32 256, 56
        %568 = vbcast.lane.b32.xlu0 %v538, %s567
        %v569 = vpop.permute.xlu0 %568
        %s571 = sor.u32 256, 64
        %572 = vbcast.lane.b32.xlu0 %v538, %s571
        %v573 = vpop.permute.xlu0 %572
        %s575 = sor.u32 256, 72
        %576 = vbcast.lane.b32.xlu0 %v538, %s575
        %v577 = vpop.permute.xlu0 %576
        %s579 = sor.u32 256, 80
        %580 = vbcast.lane.b32.xlu0 %v538, %s579
        %v581 = vpop.permute.xlu0 %580
        %s583 = sor.u32 256, 88
        %584 = vbcast.lane.b32.xlu0 %v538, %s583
        %v585 = vpop.permute.xlu0 %584
        %s587 = sor.u32 256, 96
        %588 = vbcast.lane.b32.xlu0 %v538, %s587
        %v589 = vpop.permute.xlu0 %588
        %s591 = sor.u32 256, 104
        %592 = vbcast.lane.b32.xlu0 %v538, %s591
        %v593 = vpop.permute.xlu0 %592
        %s595 = sor.u32 256, 112
        %596 = vbcast.lane.b32.xlu0 %v538, %s595
        %v597 = vpop.permute.xlu0 %596
        %s599 = sor.u32 256, 120
        %600 = vbcast.lane.b32.xlu0 %v538, %s599
        %v601 = vpop.permute.xlu0 %600
        %v602 = vlaneseq
        %v603 = vshrl.u32 %v602, 7
        %v604 = vsub.s32 3, %v603
        %v605 = vrot.slane %v198, %v604
        %607 = vbcast.lane.b32.xlu0 %v605, 256
        %v608 = vpop.permute.xlu0 %607
        %s610 = sor.u32 256, 8
        %611 = vbcast.lane.b32.xlu0 %v605, %s610
        %v612 = vpop.permute.xlu0 %611
        %s614 = sor.u32 256, 16
        %615 = vbcast.lane.b32.xlu0 %v605, %s614
        %v616 = vpop.permute.xlu0 %615
        %s618 = sor.u32 256, 24
        %619 = vbcast.lane.b32.xlu0 %v605, %s618
        %v620 = vpop.permute.xlu0 %619
        %s622 = sor.u32 256, 32
        %623 = vbcast.lane.b32.xlu0 %v605, %s622
        %v624 = vpop.permute.xlu0 %623
        %s626 = sor.u32 256, 40
        %627 = vbcast.lane.b32.xlu0 %v605, %s626
        %v628 = vpop.permute.xlu0 %627
        %s630 = sor.u32 256, 48
        %631 = vbcast.lane.b32.xlu0 %v605, %s630
        %v632 = vpop.permute.xlu0 %631
        %s634 = sor.u32 256, 56
        %635 = vbcast.lane.b32.xlu0 %v605, %s634
        %v636 = vpop.permute.xlu0 %635
        %s638 = sor.u32 256, 64
        %639 = vbcast.lane.b32.xlu0 %v605, %s638
        %v640 = vpop.permute.xlu0 %639
        %s642 = sor.u32 256, 72
        %643 = vbcast.lane.b32.xlu0 %v605, %s642
        %v644 = vpop.permute.xlu0 %643
        %s646 = sor.u32 256, 80
        %647 = vbcast.lane.b32.xlu0 %v605, %s646
        %v648 = vpop.permute.xlu0 %647
        %s650 = sor.u32 256, 88
        %651 = vbcast.lane.b32.xlu0 %v605, %s650
        %v652 = vpop.permute.xlu0 %651
        %s654 = sor.u32 256, 96
        %655 = vbcast.lane.b32.xlu0 %v605, %s654
        %v656 = vpop.permute.xlu0 %655
        %s658 = sor.u32 256, 104
        %659 = vbcast.lane.b32.xlu0 %v605, %s658
        %v660 = vpop.permute.xlu0 %659
        %s662 = sor.u32 256, 112
        %663 = vbcast.lane.b32.xlu0 %v605, %s662
        %v664 = vpop.permute.xlu0 %663
        %s666 = sor.u32 256, 120
        %667 = vbcast.lane.b32.xlu0 %v605, %s666
        %v668 = vpop.permute.xlu0 %667
        %v669 = vlaneseq
        %v670 = vshrl.u32 %v669, 7
        %v671 = vsub.s32 3, %v670
        %v672 = vrot.slane %v199, %v671
        %674 = vbcast.lane.b32.xlu0 %v672, 256
        %v675 = vpop.permute.xlu0 %674
        %s677 = sor.u32 256, 8
        %678 = vbcast.lane.b32.xlu0 %v672, %s677
        %v679 = vpop.permute.xlu0 %678
        %s681 = sor.u32 256, 16
        %682 = vbcast.lane.b32.xlu0 %v672, %s681
        %v683 = vpop.permute.xlu0 %682
        %s685 = sor.u32 256, 24
        %686 = vbcast.lane.b32.xlu0 %v672, %s685
        %v687 = vpop.permute.xlu0 %686
        %s689 = sor.u32 256, 32
        %690 = vbcast.lane.b32.xlu0 %v672, %s689
        %v691 = vpop.permute.xlu0 %690
        %s693 = sor.u32 256, 40
        %694 = vbcast.lane.b32.xlu0 %v672, %s693
        %v695 = vpop.permute.xlu0 %694
        %s697 = sor.u32 256, 48
        %698 = vbcast.lane.b32.xlu0 %v672, %s697
        %v699 = vpop.permute.xlu0 %698
        %s701 = sor.u32 256, 56
        %702 = vbcast.lane.b32.xlu0 %v672, %s701
        %v703 = vpop.permute.xlu0 %702
        %s705 = sor.u32 256, 64
        %706 = vbcast.lane.b32.xlu0 %v672, %s705
        %v707 = vpop.permute.xlu0 %706
        %s709 = sor.u32 256, 72
        %710 = vbcast.lane.b32.xlu0 %v672, %s709
        %v711 = vpop.permute.xlu0 %710
        %s713 = sor.u32 256, 80
        %714 = vbcast.lane.b32.xlu0 %v672, %s713
        %v715 = vpop.permute.xlu0 %714
        %s717 = sor.u32 256, 88
        %718 = vbcast.lane.b32.xlu0 %v672, %s717
        %v719 = vpop.permute.xlu0 %718
        %s721 = sor.u32 256, 96
        %722 = vbcast.lane.b32.xlu0 %v672, %s721
        %v723 = vpop.permute.xlu0 %722
        %s725 = sor.u32 256, 104
        %726 = vbcast.lane.b32.xlu0 %v672, %s725
        %v727 = vpop.permute.xlu0 %726
        %s729 = sor.u32 256, 112
        %730 = vbcast.lane.b32.xlu0 %v672, %s729
        %v731 = vpop.permute.xlu0 %730
        %s733 = sor.u32 256, 120
        %734 = vbcast.lane.b32.xlu0 %v672, %s733
        %v735 = vpop.permute.xlu0 %734
        %v736 = vlaneseq
        %v737 = vshrl.u32 %v736, 7
        %v738 = vsub.s32 4, %v737
        %v739 = vrot.slane %v198, %v738
        %741 = vbcast.lane.b32.xlu0 %v739, 256
        %v742 = vpop.permute.xlu0 %741
        %s744 = sor.u32 256, 8
        %745 = vbcast.lane.b32.xlu0 %v739, %s744
        %v746 = vpop.permute.xlu0 %745
        %s748 = sor.u32 256, 16
        %749 = vbcast.lane.b32.xlu0 %v739, %s748
        %v750 = vpop.permute.xlu0 %749
        %s752 = sor.u32 256, 24
        %753 = vbcast.lane.b32.xlu0 %v739, %s752
        %v754 = vpop.permute.xlu0 %753
        %s756 = sor.u32 256, 32
        %757 = vbcast.lane.b32.xlu0 %v739, %s756
        %v758 = vpop.permute.xlu0 %757
        %s760 = sor.u32 256, 40
        %761 = vbcast.lane.b32.xlu0 %v739, %s760
        %v762 = vpop.permute.xlu0 %761
        %s764 = sor.u32 256, 48
        %765 = vbcast.lane.b32.xlu0 %v739, %s764
        %v766 = vpop.permute.xlu0 %765
        %s768 = sor.u32 256, 56
        %769 = vbcast.lane.b32.xlu0 %v739, %s768
        %v770 = vpop.permute.xlu0 %769
        %s772 = sor.u32 256, 64
        %773 = vbcast.lane.b32.xlu0 %v739, %s772
        %v774 = vpop.permute.xlu0 %773
        %s776 = sor.u32 256, 72
        %777 = vbcast.lane.b32.xlu0 %v739, %s776
        %v778 = vpop.permute.xlu0 %777
        %s780 = sor.u32 256, 80
        %781 = vbcast.lane.b32.xlu0 %v739, %s780
        %v782 = vpop.permute.xlu0 %781
        %s784 = sor.u32 256, 88
        %785 = vbcast.lane.b32.xlu0 %v739, %s784
        %v786 = vpop.permute.xlu0 %785
        %s788 = sor.u32 256, 96
        %789 = vbcast.lane.b32.xlu0 %v739, %s788
        %v790 = vpop.permute.xlu0 %789
        %s792 = sor.u32 256, 104
        %793 = vbcast.lane.b32.xlu0 %v739, %s792
        %v794 = vpop.permute.xlu0 %793
        %s796 = sor.u32 256, 112
        %797 = vbcast.lane.b32.xlu0 %v739, %s796
        %v798 = vpop.permute.xlu0 %797
        %s800 = sor.u32 256, 120
        %801 = vbcast.lane.b32.xlu0 %v739, %s800
        %v802 = vpop.permute.xlu0 %801
        %v803 = vlaneseq
        %v804 = vshrl.u32 %v803, 7
        %v805 = vsub.s32 4, %v804
        %v806 = vrot.slane %v199, %v805
        %808 = vbcast.lane.b32.xlu0 %v806, 256
        %v809 = vpop.permute.xlu0 %808
        %s811 = sor.u32 256, 8
        %812 = vbcast.lane.b32.xlu0 %v806, %s811
        %v813 = vpop.permute.xlu0 %812
        %s815 = sor.u32 256, 16
        %816 = vbcast.lane.b32.xlu0 %v806, %s815
        %v817 = vpop.permute.xlu0 %816
        %s819 = sor.u32 256, 24
        %820 = vbcast.lane.b32.xlu0 %v806, %s819
        %v821 = vpop.permute.xlu0 %820
        %s823 = sor.u32 256, 32
        %824 = vbcast.lane.b32.xlu0 %v806, %s823
        %v825 = vpop.permute.xlu0 %824
        %s827 = sor.u32 256, 40
        %828 = vbcast.lane.b32.xlu0 %v806, %s827
        %v829 = vpop.permute.xlu0 %828
        %s831 = sor.u32 256, 48
        %832 = vbcast.lane.b32.xlu0 %v806, %s831
        %v833 = vpop.permute.xlu0 %832
        %s835 = sor.u32 256, 56
        %836 = vbcast.lane.b32.xlu0 %v806, %s835
        %v837 = vpop.permute.xlu0 %836
        %s839 = sor.u32 256, 64
        %840 = vbcast.lane.b32.xlu0 %v806, %s839
        %v841 = vpop.permute.xlu0 %840
        %s843 = sor.u32 256, 72
        %844 = vbcast.lane.b32.xlu0 %v806, %s843
        %v845 = vpop.permute.xlu0 %844
        %s847 = sor.u32 256, 80
        %848 = vbcast.lane.b32.xlu0 %v806, %s847
        %v849 = vpop.permute.xlu0 %848
        %s851 = sor.u32 256, 88
        %852 = vbcast.lane.b32.xlu0 %v806, %s851
        %v853 = vpop.permute.xlu0 %852
        %s855 = sor.u32 256, 96
        %856 = vbcast.lane.b32.xlu0 %v806, %s855
        %v857 = vpop.permute.xlu0 %856
        %s859 = sor.u32 256, 104
        %860 = vbcast.lane.b32.xlu0 %v806, %s859
        %v861 = vpop.permute.xlu0 %860
        %s863 = sor.u32 256, 112
        %864 = vbcast.lane.b32.xlu0 %v806, %s863
        %v865 = vpop.permute.xlu0 %864
        %s867 = sor.u32 256, 120
        %868 = vbcast.lane.b32.xlu0 %v806, %s867
        %v869 = vpop.permute.xlu0 %868
        %v870 = vlaneseq
        %v871 = vshrl.u32 %v870, 7
        %v872 = vsub.s32 5, %v871
        %v873 = vrot.slane %v198, %v872
        %875 = vbcast.lane.b32.xlu0 %v873, 256
        %v876 = vpop.permute.xlu0 %875
        %s878 = sor.u32 256, 8
        %879 = vbcast.lane.b32.xlu0 %v873, %s878
        %v880 = vpop.permute.xlu0 %879
        %s882 = sor.u32 256, 16
        %883 = vbcast.lane.b32.xlu0 %v873, %s882
        %v884 = vpop.permute.xlu0 %883
        %s886 = sor.u32 256, 24
        %887 = vbcast.lane.b32.xlu0 %v873, %s886
        %v888 = vpop.permute.xlu0 %887
        %s890 = sor.u32 256, 32
        %891 = vbcast.lane.b32.xlu0 %v873, %s890
        %v892 = vpop.permute.xlu0 %891
        %s894 = sor.u32 256, 40
        %895 = vbcast.lane.b32.xlu0 %v873, %s894
        %v896 = vpop.permute.xlu0 %895
        %s898 = sor.u32 256, 48
        %899 = vbcast.lane.b32.xlu0 %v873, %s898
        %v900 = vpop.permute.xlu0 %899
        %s902 = sor.u32 256, 56
        %903 = vbcast.lane.b32.xlu0 %v873, %s902
        %v904 = vpop.permute.xlu0 %903
        %s906 = sor.u32 256, 64
        %907 = vbcast.lane.b32.xlu0 %v873, %s906
        %v908 = vpop.permute.xlu0 %907
        %s910 = sor.u32 256, 72
        %911 = vbcast.lane.b32.xlu0 %v873, %s910
        %v912 = vpop.permute.xlu0 %911
        %s914 = sor.u32 256, 80
        %915 = vbcast.lane.b32.xlu0 %v873, %s914
        %v916 = vpop.permute.xlu0 %915
        %s918 = sor.u32 256, 88
        %919 = vbcast.lane.b32.xlu0 %v873, %s918
        %v920 = vpop.permute.xlu0 %919
        %s922 = sor.u32 256, 96
        %923 = vbcast.lane.b32.xlu0 %v873, %s922
        %v924 = vpop.permute.xlu0 %923
        %s926 = sor.u32 256, 104
        %927 = vbcast.lane.b32.xlu0 %v873, %s926
        %v928 = vpop.permute.xlu0 %927
        %s930 = sor.u32 256, 112
        %931 = vbcast.lane.b32.xlu0 %v873, %s930
        %v932 = vpop.permute.xlu0 %931
        %s934 = sor.u32 256, 120
        %935 = vbcast.lane.b32.xlu0 %v873, %s934
        %v936 = vpop.permute.xlu0 %935
        %v937 = vlaneseq
        %v938 = vshrl.u32 %v937, 7
        %v939 = vsub.s32 5, %v938
        %v940 = vrot.slane %v199, %v939
        %942 = vbcast.lane.b32.xlu0 %v940, 256
        %v943 = vpop.permute.xlu0 %942
        %s945 = sor.u32 256, 8
        %946 = vbcast.lane.b32.xlu0 %v940, %s945
        %v947 = vpop.permute.xlu0 %946
        %s949 = sor.u32 256, 16
        %950 = vbcast.lane.b32.xlu0 %v940, %s949
        %v951 = vpop.permute.xlu0 %950
        %s953 = sor.u32 256, 24
        %954 = vbcast.lane.b32.xlu0 %v940, %s953
        %v955 = vpop.permute.xlu0 %954
        %s957 = sor.u32 256, 32
        %958 = vbcast.lane.b32.xlu0 %v940, %s957
        %v959 = vpop.permute.xlu0 %958
        %s961 = sor.u32 256, 40
        %962 = vbcast.lane.b32.xlu0 %v940, %s961
        %v963 = vpop.permute.xlu0 %962
        %s965 = sor.u32 256, 48
        %966 = vbcast.lane.b32.xlu0 %v940, %s965
        %v967 = vpop.permute.xlu0 %966
        %s969 = sor.u32 256, 56
        %970 = vbcast.lane.b32.xlu0 %v940, %s969
        %v971 = vpop.permute.xlu0 %970
        %s973 = sor.u32 256, 64
        %974 = vbcast.lane.b32.xlu0 %v940, %s973
        %v975 = vpop.permute.xlu0 %974
        %s977 = sor.u32 256, 72
        %978 = vbcast.lane.b32.xlu0 %v940, %s977
        %v979 = vpop.permute.xlu0 %978
        %s981 = sor.u32 256, 80
        %982 = vbcast.lane.b32.xlu0 %v940, %s981
        %v983 = vpop.permute.xlu0 %982
        %s985 = sor.u32 256, 88
        %986 = vbcast.lane.b32.xlu0 %v940, %s985
        %v987 = vpop.permute.xlu0 %986
        %s989 = sor.u32 256, 96
        %990 = vbcast.lane.b32.xlu0 %v940, %s989
        %v991 = vpop.permute.xlu0 %990
        %s993 = sor.u32 256, 104
        %994 = vbcast.lane.b32.xlu0 %v940, %s993
        %v995 = vpop.permute.xlu0 %994
        %s997 = sor.u32 256, 112
        %998 = vbcast.lane.b32.xlu0 %v940, %s997
        %v999 = vpop.permute.xlu0 %998
        %s1001 = sor.u32 256, 120
        %1002 = vbcast.lane.b32.xlu0 %v940, %s1001
        %v1003 = vpop.permute.xlu0 %1002
        %v1004 = vlaneseq
        %v1005 = vshrl.u32 %v1004, 7
        %v1006 = vsub.s32 6, %v1005
        %v1007 = vrot.slane %v198, %v1006
        %1009 = vbcast.lane.b32.xlu0 %v1007, 256
        %v1010 = vpop.permute.xlu0 %1009
        %s1012 = sor.u32 256, 8
        %1013 = vbcast.lane.b32.xlu0 %v1007, %s1012
        %v1014 = vpop.permute.xlu0 %1013
        %s1016 = sor.u32 256, 16
        %1017 = vbcast.lane.b32.xlu0 %v1007, %s1016
        %v1018 = vpop.permute.xlu0 %1017
        %s1020 = sor.u32 256, 24
        %1021 = vbcast.lane.b32.xlu0 %v1007, %s1020
        %v1022 = vpop.permute.xlu0 %1021
        %s1024 = sor.u32 256, 32
        %1025 = vbcast.lane.b32.xlu0 %v1007, %s1024
        %v1026 = vpop.permute.xlu0 %1025
        %s1028 = sor.u32 256, 40
        %1029 = vbcast.lane.b32.xlu0 %v1007, %s1028
        %v1030 = vpop.permute.xlu0 %1029
        %s1032 = sor.u32 256, 48
        %1033 = vbcast.lane.b32.xlu0 %v1007, %s1032
        %v1034 = vpop.permute.xlu0 %1033
        %s1036 = sor.u32 256, 56
        %1037 = vbcast.lane.b32.xlu0 %v1007, %s1036
        %v1038 = vpop.permute.xlu0 %1037
        %s1040 = sor.u32 256, 64
        %1041 = vbcast.lane.b32.xlu0 %v1007, %s1040
        %v1042 = vpop.permute.xlu0 %1041
        %s1044 = sor.u32 256, 72
        %1045 = vbcast.lane.b32.xlu0 %v1007, %s1044
        %v1046 = vpop.permute.xlu0 %1045
        %s1048 = sor.u32 256, 80
        %1049 = vbcast.lane.b32.xlu0 %v1007, %s1048
        %v1050 = vpop.permute.xlu0 %1049
        %s1052 = sor.u32 256, 88
        %1053 = vbcast.lane.b32.xlu0 %v1007, %s1052
        %v1054 = vpop.permute.xlu0 %1053
        %s1056 = sor.u32 256, 96
        %1057 = vbcast.lane.b32.xlu0 %v1007, %s1056
        %v1058 = vpop.permute.xlu0 %1057
        %s1060 = sor.u32 256, 104
        %1061 = vbcast.lane.b32.xlu0 %v1007, %s1060
        %v1062 = vpop.permute.xlu0 %1061
        %s1064 = sor.u32 256, 112
        %1065 = vbcast.lane.b32.xlu0 %v1007, %s1064
        %v1066 = vpop.permute.xlu0 %1065
        %s1068 = sor.u32 256, 120
        %1069 = vbcast.lane.b32.xlu0 %v1007, %s1068
        %v1070 = vpop.permute.xlu0 %1069
        %v1071 = vlaneseq
        %v1072 = vshrl.u32 %v1071, 7
        %v1073 = vsub.s32 6, %v1072
        %v1074 = vrot.slane %v199, %v1073
        %1076 = vbcast.lane.b32.xlu0 %v1074, 256
        %v1077 = vpop.permute.xlu0 %1076
        %s1079 = sor.u32 256, 8
        %1080 = vbcast.lane.b32.xlu0 %v1074, %s1079
        %v1081 = vpop.permute.xlu0 %1080
        %s1083 = sor.u32 256, 16
        %1084 = vbcast.lane.b32.xlu0 %v1074, %s1083
        %v1085 = vpop.permute.xlu0 %1084
        %s1087 = sor.u32 256, 24
        %1088 = vbcast.lane.b32.xlu0 %v1074, %s1087
        %v1089 = vpop.permute.xlu0 %1088
        %s1091 = sor.u32 256, 32
        %1092 = vbcast.lane.b32.xlu0 %v1074, %s1091
        %v1093 = vpop.permute.xlu0 %1092
        %s1095 = sor.u32 256, 40
        %1096 = vbcast.lane.b32.xlu0 %v1074, %s1095
        %v1097 = vpop.permute.xlu0 %1096
        %s1099 = sor.u32 256, 48
        %1100 = vbcast.lane.b32.xlu0 %v1074, %s1099
        %v1101 = vpop.permute.xlu0 %1100
        %s1103 = sor.u32 256, 56
        %1104 = vbcast.lane.b32.xlu0 %v1074, %s1103
        %v1105 = vpop.permute.xlu0 %1104
        %s1107 = sor.u32 256, 64
        %1108 = vbcast.lane.b32.xlu0 %v1074, %s1107
        %v1109 = vpop.permute.xlu0 %1108
        %s1111 = sor.u32 256, 72
        %1112 = vbcast.lane.b32.xlu0 %v1074, %s1111
        %v1113 = vpop.permute.xlu0 %1112
        %s1115 = sor.u32 256, 80
        %1116 = vbcast.lane.b32.xlu0 %v1074, %s1115
        %v1117 = vpop.permute.xlu0 %1116
        %s1119 = sor.u32 256, 88
        %1120 = vbcast.lane.b32.xlu0 %v1074, %s1119
        %v1121 = vpop.permute.xlu0 %1120
        %s1123 = sor.u32 256, 96
        %1124 = vbcast.lane.b32.xlu0 %v1074, %s1123
        %v1125 = vpop.permute.xlu0 %1124
        %s1127 = sor.u32 256, 104
        %1128 = vbcast.lane.b32.xlu0 %v1074, %s1127
        %v1129 = vpop.permute.xlu0 %1128
        %s1131 = sor.u32 256, 112
        %1132 = vbcast.lane.b32.xlu0 %v1074, %s1131
        %v1133 = vpop.permute.xlu0 %1132
        %s1135 = sor.u32 256, 120
        %1136 = vbcast.lane.b32.xlu0 %v1074, %s1135
        %v1137 = vpop.permute.xlu0 %1136
        %v1138 = vlaneseq
        %v1139 = vshrl.u32 %v1138, 7
        %v1140 = vsub.s32 7, %v1139
        %v1141 = vrot.slane %v198, %v1140
        %1143 = vbcast.lane.b32.xlu0 %v1141, 256
        %v1144 = vpop.permute.xlu0 %1143
        %s1146 = sor.u32 256, 8
        %1147 = vbcast.lane.b32.xlu0 %v1141, %s1146
        %v1148 = vpop.permute.xlu0 %1147
        %s1150 = sor.u32 256, 16
        %1151 = vbcast.lane.b32.xlu0 %v1141, %s1150
        %v1152 = vpop.permute.xlu0 %1151
        %s1154 = sor.u32 256, 24
        %1155 = vbcast.lane.b32.xlu0 %v1141, %s1154
        %v1156 = vpop.permute.xlu0 %1155
        %s1158 = sor.u32 256, 32
        %1159 = vbcast.lane.b32.xlu0 %v1141, %s1158
        %v1160 = vpop.permute.xlu0 %1159
        %s1162 = sor.u32 256, 40
        %1163 = vbcast.lane.b32.xlu0 %v1141, %s1162
        %v1164 = vpop.permute.xlu0 %1163
        %s1166 = sor.u32 256, 48
        %1167 = vbcast.lane.b32.xlu0 %v1141, %s1166
        %v1168 = vpop.permute.xlu0 %1167
        %s1170 = sor.u32 256, 56
        %1171 = vbcast.lane.b32.xlu0 %v1141, %s1170
        %v1172 = vpop.permute.xlu0 %1171
        %s1174 = sor.u32 256, 64
        %1175 = vbcast.lane.b32.xlu0 %v1141, %s1174
        %v1176 = vpop.permute.xlu0 %1175
        %s1178 = sor.u32 256, 72
        %1179 = vbcast.lane.b32.xlu0 %v1141, %s1178
        %v1180 = vpop.permute.xlu0 %1179
        %s1182 = sor.u32 256, 80
        %1183 = vbcast.lane.b32.xlu0 %v1141, %s1182
        %v1184 = vpop.permute.xlu0 %1183
        %s1186 = sor.u32 256, 88
        %1187 = vbcast.lane.b32.xlu0 %v1141, %s1186
        %v1188 = vpop.permute.xlu0 %1187
        %s1190 = sor.u32 256, 96
        %1191 = vbcast.lane.b32.xlu0 %v1141, %s1190
        %v1192 = vpop.permute.xlu0 %1191
        %s1194 = sor.u32 256, 104
        %1195 = vbcast.lane.b32.xlu0 %v1141, %s1194
        %v1196 = vpop.permute.xlu0 %1195
        %s1198 = sor.u32 256, 112
        %1199 = vbcast.lane.b32.xlu0 %v1141, %s1198
        %v1200 = vpop.permute.xlu0 %1199
        %s1202 = sor.u32 256, 120
        %1203 = vbcast.lane.b32.xlu0 %v1141, %s1202
        %v1204 = vpop.permute.xlu0 %1203
        %v1205 = vlaneseq
        %v1206 = vshrl.u32 %v1205, 7
        %v1207 = vsub.s32 7, %v1206
        %v1208 = vrot.slane %v199, %v1207
        %1210 = vbcast.lane.b32.xlu0 %v1208, 256
        %v1211 = vpop.permute.xlu0 %1210
        %s1213 = sor.u32 256, 8
        %1214 = vbcast.lane.b32.xlu0 %v1208, %s1213
        %v1215 = vpop.permute.xlu0 %1214
        %s1217 = sor.u32 256, 16
        %1218 = vbcast.lane.b32.xlu0 %v1208, %s1217
        %v1219 = vpop.permute.xlu0 %1218
        %s1221 = sor.u32 256, 24
        %1222 = vbcast.lane.b32.xlu0 %v1208, %s1221
        %v1223 = vpop.permute.xlu0 %1222
        %s1225 = sor.u32 256, 32
        %1226 = vbcast.lane.b32.xlu0 %v1208, %s1225
        %v1227 = vpop.permute.xlu0 %1226
        %s1229 = sor.u32 256, 40
        %1230 = vbcast.lane.b32.xlu0 %v1208, %s1229
        %v1231 = vpop.permute.xlu0 %1230
        %s1233 = sor.u32 256, 48
        %1234 = vbcast.lane.b32.xlu0 %v1208, %s1233
        %v1235 = vpop.permute.xlu0 %1234
        %s1237 = sor.u32 256, 56
        %1238 = vbcast.lane.b32.xlu0 %v1208, %s1237
        %v1239 = vpop.permute.xlu0 %1238
        %s1241 = sor.u32 256, 64
        %1242 = vbcast.lane.b32.xlu0 %v1208, %s1241
        %v1243 = vpop.permute.xlu0 %1242
        %s1245 = sor.u32 256, 72
        %1246 = vbcast.lane.b32.xlu0 %v1208, %s1245
        %v1247 = vpop.permute.xlu0 %1246
        %s1249 = sor.u32 256, 80
        %1250 = vbcast.lane.b32.xlu0 %v1208, %s1249
        %v1251 = vpop.permute.xlu0 %1250
        %s1253 = sor.u32 256, 88
        %1254 = vbcast.lane.b32.xlu0 %v1208, %s1253
        %v1255 = vpop.permute.xlu0 %1254
        %s1257 = sor.u32 256, 96
        %1258 = vbcast.lane.b32.xlu0 %v1208, %s1257
        %v1259 = vpop.permute.xlu0 %1258
        %s1261 = sor.u32 256, 104
        %1262 = vbcast.lane.b32.xlu0 %v1208, %s1261
        %v1263 = vpop.permute.xlu0 %1262
        %s1265 = sor.u32 256, 112
        %1266 = vbcast.lane.b32.xlu0 %v1208, %s1265
        %v1267 = vpop.permute.xlu0 %1266
        %s1269 = sor.u32 256, 120
        %1270 = vbcast.lane.b32.xlu0 %v1208, %s1269
        %v1271 = vpop.permute.xlu0 %1270
        %v1272 = vsub.f32 %v206, %v178
        %v1273 = vsub.f32 %v210, %v178
        %v1274 = vsub.f32 %v214, %v178
        %v1275 = vsub.f32 %v218, %v178
        %v1276 = vsub.f32 %v222, %v178
        %v1277 = vsub.f32 %v226, %v178
        %v1278 = vsub.f32 %v230, %v178
        %v1279 = vsub.f32 %v234, %v178
        %v1280 = vsub.f32 %v238, %v178
        %v1281 = vsub.f32 %v242, %v178
        %v1282 = vsub.f32 %v246, %v178
        %v1283 = vsub.f32 %v250, %v178
        %v1284 = vsub.f32 %v254, %v178
        %v1285 = vsub.f32 %v258, %v178
        %v1286 = vsub.f32 %v262, %v178
        %v1287 = vsub.f32 %v266, %v178
        %v1288 = vsub.f32 %v273, %v178
        %v1289 = vsub.f32 %v277, %v178
        %v1290 = vsub.f32 %v281, %v178
        %v1291 = vsub.f32 %v285, %v178
        %v1292 = vsub.f32 %v289, %v178
        %v1293 = vsub.f32 %v293, %v178
        %v1294 = vsub.f32 %v297, %v178
        %v1295 = vsub.f32 %v301, %v178
        %v1296 = vsub.f32 %v305, %v178
        %v1297 = vsub.f32 %v309, %v178
        %v1298 = vsub.f32 %v313, %v178
        %v1299 = vsub.f32 %v317, %v178
        %v1300 = vsub.f32 %v321, %v178
        %v1301 = vsub.f32 %v325, %v178
        %v1302 = vsub.f32 %v329, %v178
        %v1303 = vsub.f32 %v333, %v178
        %v1304 = vsub.f32 %v340, %v178
        %v1305 = vsub.f32 %v344, %v178
        %v1306 = vsub.f32 %v348, %v178
        %v1307 = vsub.f32 %v352, %v178
        %v1308 = vsub.f32 %v356, %v178
        %v1309 = vsub.f32 %v360, %v178
        %v1310 = vsub.f32 %v364, %v178
        %v1311 = vsub.f32 %v368, %v178
        %v1312 = vsub.f32 %v372, %v178
        %v1313 = vsub.f32 %v376, %v178
        %v1314 = vsub.f32 %v380, %v178
        %v1315 = vsub.f32 %v384, %v178
        %v1316 = vsub.f32 %v388, %v178
        %v1317 = vsub.f32 %v392, %v178
        %v1318 = vsub.f32 %v396, %v178
        %v1319 = vsub.f32 %v400, %v178
        %v1320 = vsub.f32 %v407, %v178
        %v1321 = vsub.f32 %v411, %v178
        %v1322 = vsub.f32 %v415, %v178
        %v1323 = vsub.f32 %v419, %v178
        %v1324 = vsub.f32 %v423, %v178
        %v1325 = vsub.f32 %v427, %v178
        %v1326 = vsub.f32 %v431, %v178
        %v1327 = vsub.f32 %v435, %v178
        %v1328 = vsub.f32 %v439, %v178
        %v1329 = vsub.f32 %v443, %v178
        %v1330 = vsub.f32 %v447, %v178
        %v1331 = vsub.f32 %v451, %v178
        %v1332 = vsub.f32 %v455, %v178
        %v1333 = vsub.f32 %v459, %v178
        %v1334 = vsub.f32 %v463, %v178
        %v1335 = vsub.f32 %v467, %v178
        %v1336 = vsub.f32 %v474, %v178
        %v1337 = vsub.f32 %v478, %v178
        %v1338 = vsub.f32 %v482, %v178
        %v1339 = vsub.f32 %v486, %v178
        %v1340 = vsub.f32 %v490, %v178
        %v1341 = vsub.f32 %v494, %v178
        %v1342 = vsub.f32 %v498, %v178
        %v1343 = vsub.f32 %v502, %v178
        %v1344 = vsub.f32 %v506, %v178
        %v1345 = vsub.f32 %v510, %v178
        %v1346 = vsub.f32 %v514, %v178
        %v1347 = vsub.f32 %v518, %v178
        %v1348 = vsub.f32 %v522, %v178
        %v1349 = vsub.f32 %v526, %v178
        %v1350 = vsub.f32 %v530, %v178
        %v1351 = vsub.f32 %v534, %v178
        %v1352 = vsub.f32 %v541, %v178
        %v1353 = vsub.f32 %v545, %v178
        %v1354 = vsub.f32 %v549, %v178
        %v1355 = vsub.f32 %v553, %v178
        %v1356 = vsub.f32 %v557, %v178
        %v1357 = vsub.f32 %v561, %v178
        %v1358 = vsub.f32 %v565, %v178
        %v1359 = vsub.f32 %v569, %v178
        %v1360 = vsub.f32 %v573, %v178
        %v1361 = vsub.f32 %v577, %v178
        %v1362 = vsub.f32 %v581, %v178
        %v1363 = vsub.f32 %v585, %v178
        %v1364 = vsub.f32 %v589, %v178
        %v1365 = vsub.f32 %v593, %v178
        %v1366 = vsub.f32 %v597, %v178
        %v1367 = vsub.f32 %v601, %v178
        %v1368 = vsub.f32 %v608, %v178
        %v1369 = vsub.f32 %v612, %v178
        %v1370 = vsub.f32 %v616, %v178
        %v1371 = vsub.f32 %v620, %v178
        %v1372 = vsub.f32 %v624, %v178
        %v1373 = vsub.f32 %v628, %v178
        %v1374 = vsub.f32 %v632, %v178
        %v1375 = vsub.f32 %v636, %v178
        %v1376 = vsub.f32 %v640, %v178
        %v1377 = vsub.f32 %v644, %v178
        %v1378 = vsub.f32 %v648, %v178
        %v1379 = vsub.f32 %v652, %v178
        %v1380 = vsub.f32 %v656, %v178
        %v1381 = vsub.f32 %v660, %v178
        %v1382 = vsub.f32 %v664, %v178
        %v1383 = vsub.f32 %v668, %v178
        %v1384 = vsub.f32 %v675, %v178
        %v1385 = vsub.f32 %v679, %v178
        %v1386 = vsub.f32 %v683, %v178
        %v1387 = vsub.f32 %v687, %v178
        %v1388 = vsub.f32 %v691, %v178
        %v1389 = vsub.f32 %v695, %v178
        %v1390 = vsub.f32 %v699, %v178
        %v1391 = vsub.f32 %v703, %v178
        %v1392 = vsub.f32 %v707, %v178
        %v1393 = vsub.f32 %v711, %v178
        %v1394 = vsub.f32 %v715, %v178
        %v1395 = vsub.f32 %v719, %v178
        %v1396 = vsub.f32 %v723, %v178
        %v1397 = vsub.f32 %v727, %v178
        %v1398 = vsub.f32 %v731, %v178
        %v1399 = vsub.f32 %v735, %v178
        %v1400 = vsub.f32 %v742, %v178
        %v1401 = vsub.f32 %v746, %v178
        %v1402 = vsub.f32 %v750, %v178
        %v1403 = vsub.f32 %v754, %v178
        %v1404 = vsub.f32 %v758, %v178
        %v1405 = vsub.f32 %v762, %v178
        %v1406 = vsub.f32 %v766, %v178
        %v1407 = vsub.f32 %v770, %v178
        %v1408 = vsub.f32 %v774, %v178
        %v1409 = vsub.f32 %v778, %v178
        %v1410 = vsub.f32 %v782, %v178
        %v1411 = vsub.f32 %v786, %v178
        %v1412 = vsub.f32 %v790, %v178
        %v1413 = vsub.f32 %v794, %v178
        %v1414 = vsub.f32 %v798, %v178
        %v1415 = vsub.f32 %v802, %v178
        %v1416 = vsub.f32 %v809, %v178
        %v1417 = vsub.f32 %v813, %v178
        %v1418 = vsub.f32 %v817, %v178
        %v1419 = vsub.f32 %v821, %v178
        %v1420 = vsub.f32 %v825, %v178
        %v1421 = vsub.f32 %v829, %v178
        %v1422 = vsub.f32 %v833, %v178
        %v1423 = vsub.f32 %v837, %v178
        %v1424 = vsub.f32 %v841, %v178
        %v1425 = vsub.f32 %v845, %v178
        %v1426 = vsub.f32 %v849, %v178
        %v1427 = vsub.f32 %v853, %v178
        %v1428 = vsub.f32 %v857, %v178
        %v1429 = vsub.f32 %v861, %v178
        %v1430 = vsub.f32 %v865, %v178
        %v1431 = vsub.f32 %v869, %v178
        %v1432 = vsub.f32 %v876, %v178
        %v1433 = vsub.f32 %v880, %v178
        %v1434 = vsub.f32 %v884, %v178
        %v1435 = vsub.f32 %v888, %v178
        %v1436 = vsub.f32 %v892, %v178
        %v1437 = vsub.f32 %v896, %v178
        %v1438 = vsub.f32 %v900, %v178
        %v1439 = vsub.f32 %v904, %v178
        %v1440 = vsub.f32 %v908, %v178
        %v1441 = vsub.f32 %v912, %v178
        %v1442 = vsub.f32 %v916, %v178
        %v1443 = vsub.f32 %v920, %v178
        %v1444 = vsub.f32 %v924, %v178
        %v1445 = vsub.f32 %v928, %v178
        %v1446 = vsub.f32 %v932, %v178
        %v1447 = vsub.f32 %v936, %v178
        %v1448 = vsub.f32 %v943, %v178
        %v1449 = vsub.f32 %v947, %v178
        %v1450 = vsub.f32 %v951, %v178
        %v1451 = vsub.f32 %v955, %v178
        %v1452 = vsub.f32 %v959, %v178
        %v1453 = vsub.f32 %v963, %v178
        %v1454 = vsub.f32 %v967, %v178
        %v1455 = vsub.f32 %v971, %v178
        %v1456 = vsub.f32 %v975, %v178
        %v1457 = vsub.f32 %v979, %v178
        %v1458 = vsub.f32 %v983, %v178
        %v1459 = vsub.f32 %v987, %v178
        %v1460 = vsub.f32 %v991, %v178
        %v1461 = vsub.f32 %v995, %v178
        %v1462 = vsub.f32 %v999, %v178
        %v1463 = vsub.f32 %v1003, %v178
        %v1464 = vsub.f32 %v1010, %v178
        %v1465 = vsub.f32 %v1014, %v178
        %v1466 = vsub.f32 %v1018, %v178
        %v1467 = vsub.f32 %v1022, %v178
        %v1468 = vsub.f32 %v1026, %v178
        %v1469 = vsub.f32 %v1030, %v178
        %v1470 = vsub.f32 %v1034, %v178
        %v1471 = vsub.f32 %v1038, %v178
        %v1472 = vsub.f32 %v1042, %v178
        %v1473 = vsub.f32 %v1046, %v178
        %v1474 = vsub.f32 %v1050, %v178
        %v1475 = vsub.f32 %v1054, %v178
        %v1476 = vsub.f32 %v1058, %v178
        %v1477 = vsub.f32 %v1062, %v178
        %v1478 = vsub.f32 %v1066, %v178
        %v1479 = vsub.f32 %v1070, %v178
        %v1480 = vsub.f32 %v1077, %v178
        %v1481 = vsub.f32 %v1081, %v178
        %v1482 = vsub.f32 %v1085, %v178
        %v1483 = vsub.f32 %v1089, %v178
        %v1484 = vsub.f32 %v1093, %v178
        %v1485 = vsub.f32 %v1097, %v178
        %v1486 = vsub.f32 %v1101, %v178
        %v1487 = vsub.f32 %v1105, %v178
        %v1488 = vsub.f32 %v1109, %v178
        %v1489 = vsub.f32 %v1113, %v178
        %v1490 = vsub.f32 %v1117, %v178
        %v1491 = vsub.f32 %v1121, %v178
        %v1492 = vsub.f32 %v1125, %v178
        %v1493 = vsub.f32 %v1129, %v178
        %v1494 = vsub.f32 %v1133, %v178
        %v1495 = vsub.f32 %v1137, %v178
        %v1496 = vsub.f32 %v1144, %v178
        %v1497 = vsub.f32 %v1148, %v178
        %v1498 = vsub.f32 %v1152, %v178
        %v1499 = vsub.f32 %v1156, %v178
        %v1500 = vsub.f32 %v1160, %v178
        %v1501 = vsub.f32 %v1164, %v178
        %v1502 = vsub.f32 %v1168, %v178
        %v1503 = vsub.f32 %v1172, %v178
        %v1504 = vsub.f32 %v1176, %v178
        %v1505 = vsub.f32 %v1180, %v178
        %v1506 = vsub.f32 %v1184, %v178
        %v1507 = vsub.f32 %v1188, %v178
        %v1508 = vsub.f32 %v1192, %v178
        %v1509 = vsub.f32 %v1196, %v178
        %v1510 = vsub.f32 %v1200, %v178
        %v1511 = vsub.f32 %v1204, %v178
        %v1512 = vsub.f32 %v1211, %v178
        %v1513 = vsub.f32 %v1215, %v178
        %v1514 = vsub.f32 %v1219, %v178
        %v1515 = vsub.f32 %v1223, %v178
        %v1516 = vsub.f32 %v1227, %v178
        %v1517 = vsub.f32 %v1231, %v178
        %v1518 = vsub.f32 %v1235, %v178
        %v1519 = vsub.f32 %v1239, %v178
        %v1520 = vsub.f32 %v1243, %v178
        %v1521 = vsub.f32 %v1247, %v178
        %v1522 = vsub.f32 %v1251, %v178
        %v1523 = vsub.f32 %v1255, %v178
        %v1524 = vsub.f32 %v1259, %v178
        %v1525 = vsub.f32 %v1263, %v178
        %v1526 = vsub.f32 %v1267, %v178
        %v1527 = vsub.f32 %v1271, %v178
        %v1528 = vmul.f32 %v1272, %v1272
        %v1529 = vmul.f32 %v1273, %v1273
        %v1530 = vmul.f32 %v1274, %v1274
        %v1531 = vmul.f32 %v1275, %v1275
        %v1532 = vmul.f32 %v1276, %v1276
        %v1533 = vmul.f32 %v1277, %v1277
        %v1534 = vmul.f32 %v1278, %v1278
        %v1535 = vmul.f32 %v1279, %v1279
        %v1536 = vmul.f32 %v1280, %v1280
        %v1537 = vmul.f32 %v1281, %v1281
        %v1538 = vmul.f32 %v1282, %v1282
        %v1539 = vmul.f32 %v1283, %v1283
        %v1540 = vmul.f32 %v1284, %v1284
        %v1541 = vmul.f32 %v1285, %v1285
        %v1542 = vmul.f32 %v1286, %v1286
        %v1543 = vmul.f32 %v1287, %v1287
        %v1544 = vmul.f32 %v1288, %v1288
        %v1545 = vmul.f32 %v1289, %v1289
        %v1546 = vmul.f32 %v1290, %v1290
        %v1547 = vmul.f32 %v1291, %v1291
        %v1548 = vmul.f32 %v1292, %v1292
        %v1549 = vmul.f32 %v1293, %v1293
        %v1550 = vmul.f32 %v1294, %v1294
        %v1551 = vmul.f32 %v1295, %v1295
        %v1552 = vmul.f32 %v1296, %v1296
        %v1553 = vmul.f32 %v1297, %v1297
        %v1554 = vmul.f32 %v1298, %v1298
        %v1555 = vmul.f32 %v1299, %v1299
        %v1556 = vmul.f32 %v1300, %v1300
        %v1557 = vmul.f32 %v1301, %v1301
        %v1558 = vmul.f32 %v1302, %v1302
        %v1559 = vmul.f32 %v1303, %v1303
        %v1560 = vmul.f32 %v1304, %v1304
        %v1561 = vmul.f32 %v1305, %v1305
        %v1562 = vmul.f32 %v1306, %v1306
        %v1563 = vmul.f32 %v1307, %v1307
        %v1564 = vmul.f32 %v1308, %v1308
        %v1565 = vmul.f32 %v1309, %v1309
        %v1566 = vmul.f32 %v1310, %v1310
        %v1567 = vmul.f32 %v1311, %v1311
        %v1568 = vmul.f32 %v1312, %v1312
        %v1569 = vmul.f32 %v1313, %v1313
        %v1570 = vmul.f32 %v1314, %v1314
        %v1571 = vmul.f32 %v1315, %v1315
        %v1572 = vmul.f32 %v1316, %v1316
        %v1573 = vmul.f32 %v1317, %v1317
        %v1574 = vmul.f32 %v1318, %v1318
        %v1575 = vmul.f32 %v1319, %v1319
        %v1576 = vmul.f32 %v1320, %v1320
        %v1577 = vmul.f32 %v1321, %v1321
        %v1578 = vmul.f32 %v1322, %v1322
        %v1579 = vmul.f32 %v1323, %v1323
        %v1580 = vmul.f32 %v1324, %v1324
        %v1581 = vmul.f32 %v1325, %v1325
        %v1582 = vmul.f32 %v1326, %v1326
        %v1583 = vmul.f32 %v1327, %v1327
        %v1584 = vmul.f32 %v1328, %v1328
        %v1585 = vmul.f32 %v1329, %v1329
        %v1586 = vmul.f32 %v1330, %v1330
        %v1587 = vmul.f32 %v1331, %v1331
        %v1588 = vmul.f32 %v1332, %v1332
        %v1589 = vmul.f32 %v1333, %v1333
        %v1590 = vmul.f32 %v1334, %v1334
        %v1591 = vmul.f32 %v1335, %v1335
        %v1592 = vmul.f32 %v1336, %v1336
        %v1593 = vmul.f32 %v1337, %v1337
        %v1594 = vmul.f32 %v1338, %v1338
        %v1595 = vmul.f32 %v1339, %v1339
        %v1596 = vmul.f32 %v1340, %v1340
        %v1597 = vmul.f32 %v1341, %v1341
        %v1598 = vmul.f32 %v1342, %v1342
        %v1599 = vmul.f32 %v1343, %v1343
        %v1600 = vmul.f32 %v1344, %v1344
        %v1601 = vmul.f32 %v1345, %v1345
        %v1602 = vmul.f32 %v1346, %v1346
        %v1603 = vmul.f32 %v1347, %v1347
        %v1604 = vmul.f32 %v1348, %v1348
        %v1605 = vmul.f32 %v1349, %v1349
        %v1606 = vmul.f32 %v1350, %v1350
        %v1607 = vmul.f32 %v1351, %v1351
        %v1608 = vmul.f32 %v1352, %v1352
        %v1609 = vmul.f32 %v1353, %v1353
        %v1610 = vmul.f32 %v1354, %v1354
        %v1611 = vmul.f32 %v1355, %v1355
        %v1612 = vmul.f32 %v1356, %v1356
        %v1613 = vmul.f32 %v1357, %v1357
        %v1614 = vmul.f32 %v1358, %v1358
        %v1615 = vmul.f32 %v1359, %v1359
        %v1616 = vmul.f32 %v1360, %v1360
        %v1617 = vmul.f32 %v1361, %v1361
        %v1618 = vmul.f32 %v1362, %v1362
        %v1619 = vmul.f32 %v1363, %v1363
        %v1620 = vmul.f32 %v1364, %v1364
        %v1621 = vmul.f32 %v1365, %v1365
        %v1622 = vmul.f32 %v1366, %v1366
        %v1623 = vmul.f32 %v1367, %v1367
        %v1624 = vmul.f32 %v1368, %v1368
        %v1625 = vmul.f32 %v1369, %v1369
        %v1626 = vmul.f32 %v1370, %v1370
        %v1627 = vmul.f32 %v1371, %v1371
        %v1628 = vmul.f32 %v1372, %v1372
        %v1629 = vmul.f32 %v1373, %v1373
        %v1630 = vmul.f32 %v1374, %v1374
        %v1631 = vmul.f32 %v1375, %v1375
        %v1632 = vmul.f32 %v1376, %v1376
        %v1633 = vmul.f32 %v1377, %v1377
        %v1634 = vmul.f32 %v1378, %v1378
        %v1635 = vmul.f32 %v1379, %v1379
        %v1636 = vmul.f32 %v1380, %v1380
        %v1637 = vmul.f32 %v1381, %v1381
        %v1638 = vmul.f32 %v1382, %v1382
        %v1639 = vmul.f32 %v1383, %v1383
        %v1640 = vmul.f32 %v1384, %v1384
        %v1641 = vmul.f32 %v1385, %v1385
        %v1642 = vmul.f32 %v1386, %v1386
        %v1643 = vmul.f32 %v1387, %v1387
        %v1644 = vmul.f32 %v1388, %v1388
        %v1645 = vmul.f32 %v1389, %v1389
        %v1646 = vmul.f32 %v1390, %v1390
        %v1647 = vmul.f32 %v1391, %v1391
        %v1648 = vmul.f32 %v1392, %v1392
        %v1649 = vmul.f32 %v1393, %v1393
        %v1650 = vmul.f32 %v1394, %v1394
        %v1651 = vmul.f32 %v1395, %v1395
        %v1652 = vmul.f32 %v1396, %v1396
        %v1653 = vmul.f32 %v1397, %v1397
        %v1654 = vmul.f32 %v1398, %v1398
        %v1655 = vmul.f32 %v1399, %v1399
        %v1656 = vmul.f32 %v1400, %v1400
        %v1657 = vmul.f32 %v1401, %v1401
        %v1658 = vmul.f32 %v1402, %v1402
        %v1659 = vmul.f32 %v1403, %v1403
        %v1660 = vmul.f32 %v1404, %v1404
        %v1661 = vmul.f32 %v1405, %v1405
        %v1662 = vmul.f32 %v1406, %v1406
        %v1663 = vmul.f32 %v1407, %v1407
        %v1664 = vmul.f32 %v1408, %v1408
        %v1665 = vmul.f32 %v1409, %v1409
        %v1666 = vmul.f32 %v1410, %v1410
        %v1667 = vmul.f32 %v1411, %v1411
        %v1668 = vmul.f32 %v1412, %v1412
        %v1669 = vmul.f32 %v1413, %v1413
        %v1670 = vmul.f32 %v1414, %v1414
        %v1671 = vmul.f32 %v1415, %v1415
        %v1672 = vmul.f32 %v1416, %v1416
        %v1673 = vmul.f32 %v1417, %v1417
        %v1674 = vmul.f32 %v1418, %v1418
        %v1675 = vmul.f32 %v1419, %v1419
        %v1676 = vmul.f32 %v1420, %v1420
        %v1677 = vmul.f32 %v1421, %v1421
        %v1678 = vmul.f32 %v1422, %v1422
        %v1679 = vmul.f32 %v1423, %v1423
        %v1680 = vmul.f32 %v1424, %v1424
        %v1681 = vmul.f32 %v1425, %v1425
        %v1682 = vmul.f32 %v1426, %v1426
        %v1683 = vmul.f32 %v1427, %v1427
        %v1684 = vmul.f32 %v1428, %v1428
        %v1685 = vmul.f32 %v1429, %v1429
        %v1686 = vmul.f32 %v1430, %v1430
        %v1687 = vmul.f32 %v1431, %v1431
        %v1688 = vmul.f32 %v1432, %v1432
        %v1689 = vmul.f32 %v1433, %v1433
        %v1690 = vmul.f32 %v1434, %v1434
        %v1691 = vmul.f32 %v1435, %v1435
        %v1692 = vmul.f32 %v1436, %v1436
        %v1693 = vmul.f32 %v1437, %v1437
        %v1694 = vmul.f32 %v1438, %v1438
        %v1695 = vmul.f32 %v1439, %v1439
        %v1696 = vmul.f32 %v1440, %v1440
        %v1697 = vmul.f32 %v1441, %v1441
        %v1698 = vmul.f32 %v1442, %v1442
        %v1699 = vmul.f32 %v1443, %v1443
        %v1700 = vmul.f32 %v1444, %v1444
        %v1701 = vmul.f32 %v1445, %v1445
        %v1702 = vmul.f32 %v1446, %v1446
        %v1703 = vmul.f32 %v1447, %v1447
        %v1704 = vmul.f32 %v1448, %v1448
        %v1705 = vmul.f32 %v1449, %v1449
        %v1706 = vmul.f32 %v1450, %v1450
        %v1707 = vmul.f32 %v1451, %v1451
        %v1708 = vmul.f32 %v1452, %v1452
        %v1709 = vmul.f32 %v1453, %v1453
        %v1710 = vmul.f32 %v1454, %v1454
        %v1711 = vmul.f32 %v1455, %v1455
        %v1712 = vmul.f32 %v1456, %v1456
        %v1713 = vmul.f32 %v1457, %v1457
        %v1714 = vmul.f32 %v1458, %v1458
        %v1715 = vmul.f32 %v1459, %v1459
        %v1716 = vmul.f32 %v1460, %v1460
        %v1717 = vmul.f32 %v1461, %v1461
        %v1718 = vmul.f32 %v1462, %v1462
        %v1719 = vmul.f32 %v1463, %v1463
        %v1720 = vmul.f32 %v1464, %v1464
        %v1721 = vmul.f32 %v1465, %v1465
        %v1722 = vmul.f32 %v1466, %v1466
        %v1723 = vmul.f32 %v1467, %v1467
        %v1724 = vmul.f32 %v1468, %v1468
        %v1725 = vmul.f32 %v1469, %v1469
        %v1726 = vmul.f32 %v1470, %v1470
        %v1727 = vmul.f32 %v1471, %v1471
        %v1728 = vmul.f32 %v1472, %v1472
        %v1729 = vmul.f32 %v1473, %v1473
        %v1730 = vmul.f32 %v1474, %v1474
        %v1731 = vmul.f32 %v1475, %v1475
        %v1732 = vmul.f32 %v1476, %v1476
        %v1733 = vmul.f32 %v1477, %v1477
        %v1734 = vmul.f32 %v1478, %v1478
        %v1735 = vmul.f32 %v1479, %v1479
        %v1736 = vmul.f32 %v1480, %v1480
        %v1737 = vmul.f32 %v1481, %v1481
        %v1738 = vmul.f32 %v1482, %v1482
        %v1739 = vmul.f32 %v1483, %v1483
        %v1740 = vmul.f32 %v1484, %v1484
        %v1741 = vmul.f32 %v1485, %v1485
        %v1742 = vmul.f32 %v1486, %v1486
        %v1743 = vmul.f32 %v1487, %v1487
        %v1744 = vmul.f32 %v1488, %v1488
        %v1745 = vmul.f32 %v1489, %v1489
        %v1746 = vmul.f32 %v1490, %v1490
        %v1747 = vmul.f32 %v1491, %v1491
        %v1748 = vmul.f32 %v1492, %v1492
        %v1749 = vmul.f32 %v1493, %v1493
        %v1750 = vmul.f32 %v1494, %v1494
        %v1751 = vmul.f32 %v1495, %v1495
        %v1752 = vmul.f32 %v1496, %v1496
        %v1753 = vmul.f32 %v1497, %v1497
        %v1754 = vmul.f32 %v1498, %v1498
        %v1755 = vmul.f32 %v1499, %v1499
        %v1756 = vmul.f32 %v1500, %v1500
        %v1757 = vmul.f32 %v1501, %v1501
        %v1758 = vmul.f32 %v1502, %v1502
        %v1759 = vmul.f32 %v1503, %v1503
        %v1760 = vmul.f32 %v1504, %v1504
        %v1761 = vmul.f32 %v1505, %v1505
        %v1762 = vmul.f32 %v1506, %v1506
        %v1763 = vmul.f32 %v1507, %v1507
        %v1764 = vmul.f32 %v1508, %v1508
        %v1765 = vmul.f32 %v1509, %v1509
        %v1766 = vmul.f32 %v1510, %v1510
        %v1767 = vmul.f32 %v1511, %v1511
        %v1768 = vmul.f32 %v1512, %v1512
        %v1769 = vmul.f32 %v1513, %v1513
        %v1770 = vmul.f32 %v1514, %v1514
        %v1771 = vmul.f32 %v1515, %v1515
        %v1772 = vmul.f32 %v1516, %v1516
        %v1773 = vmul.f32 %v1517, %v1517
        %v1774 = vmul.f32 %v1518, %v1518
        %v1775 = vmul.f32 %v1519, %v1519
        %v1776 = vmul.f32 %v1520, %v1520
        %v1777 = vmul.f32 %v1521, %v1521
        %v1778 = vmul.f32 %v1522, %v1522
        %v1779 = vmul.f32 %v1523, %v1523
        %v1780 = vmul.f32 %v1524, %v1524
        %v1781 = vmul.f32 %v1525, %v1525
        %v1782 = vmul.f32 %v1526, %v1526
        %v1783 = vmul.f32 %v1527, %v1527
        %v1784 = vmul.f32 %v1528, -0.0768935
        %v1785 = vmul.f32 %v1529, -0.0768935
        %v1786 = vmul.f32 %v1530, -0.0768935
        %v1787 = vmul.f32 %v1531, -0.0768935
        %v1788 = vmul.f32 %v1532, -0.0768935
        %v1789 = vmul.f32 %v1533, -0.0768935
        %v1790 = vmul.f32 %v1534, -0.0768935
        %v1791 = vmul.f32 %v1535, -0.0768935
        %v1792 = vmul.f32 %v1536, -0.0768935
        %v1793 = vmul.f32 %v1537, -0.0768935
        %v1794 = vmul.f32 %v1538, -0.0768935
        %v1795 = vmul.f32 %v1539, -0.0768935
        %v1796 = vmul.f32 %v1540, -0.0768935
        %v1797 = vmul.f32 %v1541, -0.0768935
        %v1798 = vmul.f32 %v1542, -0.0768935
        %v1799 = vmul.f32 %v1543, -0.0768935
        %v1800 = vmul.f32 %v1544, -0.0768935
        %v1801 = vmul.f32 %v1545, -0.0768935
        %v1802 = vmul.f32 %v1546, -0.0768935
        %v1803 = vmul.f32 %v1547, -0.0768935
        %v1804 = vmul.f32 %v1548, -0.0768935
        %v1805 = vmul.f32 %v1549, -0.0768935
        %v1806 = vmul.f32 %v1550, -0.0768935
        %v1807 = vmul.f32 %v1551, -0.0768935
        %v1808 = vmul.f32 %v1552, -0.0768935
        %v1809 = vmul.f32 %v1553, -0.0768935
        %v1810 = vmul.f32 %v1554, -0.0768935
        %v1811 = vmul.f32 %v1555, -0.0768935
        %v1812 = vmul.f32 %v1556, -0.0768935
        %v1813 = vmul.f32 %v1557, -0.0768935
        %v1814 = vmul.f32 %v1558, -0.0768935
        %v1815 = vmul.f32 %v1559, -0.0768935
        %v1816 = vmul.f32 %v1560, -0.0768935
        %v1817 = vmul.f32 %v1561, -0.0768935
        %v1818 = vmul.f32 %v1562, -0.0768935
        %v1819 = vmul.f32 %v1563, -0.0768935
        %v1820 = vmul.f32 %v1564, -0.0768935
        %v1821 = vmul.f32 %v1565, -0.0768935
        %v1822 = vmul.f32 %v1566, -0.0768935
        %v1823 = vmul.f32 %v1567, -0.0768935
        %v1824 = vmul.f32 %v1568, -0.0768935
        %v1825 = vmul.f32 %v1569, -0.0768935
        %v1826 = vmul.f32 %v1570, -0.0768935
        %v1827 = vmul.f32 %v1571, -0.0768935
        %v1828 = vmul.f32 %v1572, -0.0768935
        %v1829 = vmul.f32 %v1573, -0.0768935
        %v1830 = vmul.f32 %v1574, -0.0768935
        %v1831 = vmul.f32 %v1575, -0.0768935
        %v1832 = vmul.f32 %v1576, -0.0768935
        %v1833 = vmul.f32 %v1577, -0.0768935
        %v1834 = vmul.f32 %v1578, -0.0768935
        %v1835 = vmul.f32 %v1579, -0.0768935
        %v1836 = vmul.f32 %v1580, -0.0768935
        %v1837 = vmul.f32 %v1581, -0.0768935
        %v1838 = vmul.f32 %v1582, -0.0768935
        %v1839 = vmul.f32 %v1583, -0.0768935
        %v1840 = vmul.f32 %v1584, -0.0768935
        %v1841 = vmul.f32 %v1585, -0.0768935
        %v1842 = vmul.f32 %v1586, -0.0768935
        %v1843 = vmul.f32 %v1587, -0.0768935
        %v1844 = vmul.f32 %v1588, -0.0768935
        %v1845 = vmul.f32 %v1589, -0.0768935
        %v1846 = vmul.f32 %v1590, -0.0768935
        %v1847 = vmul.f32 %v1591, -0.0768935
        %v1848 = vmul.f32 %v1592, -0.0768935
        %v1849 = vmul.f32 %v1593, -0.0768935
        %v1850 = vmul.f32 %v1594, -0.0768935
        %v1851 = vmul.f32 %v1595, -0.0768935
        %v1852 = vmul.f32 %v1596, -0.0768935
        %v1853 = vmul.f32 %v1597, -0.0768935
        %v1854 = vmul.f32 %v1598, -0.0768935
        %v1855 = vmul.f32 %v1599, -0.0768935
        %v1856 = vmul.f32 %v1600, -0.0768935
        %v1857 = vmul.f32 %v1601, -0.0768935
        %v1858 = vmul.f32 %v1602, -0.0768935
        %v1859 = vmul.f32 %v1603, -0.0768935
        %v1860 = vmul.f32 %v1604, -0.0768935
        %v1861 = vmul.f32 %v1605, -0.0768935
        %v1862 = vmul.f32 %v1606, -0.0768935
        %v1863 = vmul.f32 %v1607, -0.0768935
        %v1864 = vmul.f32 %v1608, -0.0768935
        %v1865 = vmul.f32 %v1609, -0.0768935
        %v1866 = vmul.f32 %v1610, -0.0768935
        %v1867 = vmul.f32 %v1611, -0.0768935
        %v1868 = vmul.f32 %v1612, -0.0768935
        %v1869 = vmul.f32 %v1613, -0.0768935
        %v1870 = vmul.f32 %v1614, -0.0768935
        %v1871 = vmul.f32 %v1615, -0.0768935
        %v1872 = vmul.f32 %v1616, -0.0768935
        %v1873 = vmul.f32 %v1617, -0.0768935
        %v1874 = vmul.f32 %v1618, -0.0768935
        %v1875 = vmul.f32 %v1619, -0.0768935
        %v1876 = vmul.f32 %v1620, -0.0768935
        %v1877 = vmul.f32 %v1621, -0.0768935
        %v1878 = vmul.f32 %v1622, -0.0768935
        %v1879 = vmul.f32 %v1623, -0.0768935
        %v1880 = vmul.f32 %v1624, -0.0768935
        %v1881 = vmul.f32 %v1625, -0.0768935
        %v1882 = vmul.f32 %v1626, -0.0768935
        %v1883 = vmul.f32 %v1627, -0.0768935
        %v1884 = vmul.f32 %v1628, -0.0768935
        %v1885 = vmul.f32 %v1629, -0.0768935
        %v1886 = vmul.f32 %v1630, -0.0768935
        %v1887 = vmul.f32 %v1631, -0.0768935
        %v1888 = vmul.f32 %v1632, -0.0768935
        %v1889 = vmul.f32 %v1633, -0.0768935
        %v1890 = vmul.f32 %v1634, -0.0768935
        %v1891 = vmul.f32 %v1635, -0.0768935
        %v1892 = vmul.f32 %v1636, -0.0768935
        %v1893 = vmul.f32 %v1637, -0.0768935
        %v1894 = vmul.f32 %v1638, -0.0768935
        %v1895 = vmul.f32 %v1639, -0.0768935
        %v1896 = vmul.f32 %v1640, -0.0768935
        %v1897 = vmul.f32 %v1641, -0.0768935
        %v1898 = vmul.f32 %v1642, -0.0768935
        %v1899 = vmul.f32 %v1643, -0.0768935
        %v1900 = vmul.f32 %v1644, -0.0768935
        %v1901 = vmul.f32 %v1645, -0.0768935
        %v1902 = vmul.f32 %v1646, -0.0768935
        %v1903 = vmul.f32 %v1647, -0.0768935
        %v1904 = vmul.f32 %v1648, -0.0768935
        %v1905 = vmul.f32 %v1649, -0.0768935
        %v1906 = vmul.f32 %v1650, -0.0768935
        %v1907 = vmul.f32 %v1651, -0.0768935
        %v1908 = vmul.f32 %v1652, -0.0768935
        %v1909 = vmul.f32 %v1653, -0.0768935
        %v1910 = vmul.f32 %v1654, -0.0768935
        %v1911 = vmul.f32 %v1655, -0.0768935
        %v1912 = vmul.f32 %v1656, -0.0768935
        %v1913 = vmul.f32 %v1657, -0.0768935
        %v1914 = vmul.f32 %v1658, -0.0768935
        %v1915 = vmul.f32 %v1659, -0.0768935
        %v1916 = vmul.f32 %v1660, -0.0768935
        %v1917 = vmul.f32 %v1661, -0.0768935
        %v1918 = vmul.f32 %v1662, -0.0768935
        %v1919 = vmul.f32 %v1663, -0.0768935
        %v1920 = vmul.f32 %v1664, -0.0768935
        %v1921 = vmul.f32 %v1665, -0.0768935
        %v1922 = vmul.f32 %v1666, -0.0768935
        %v1923 = vmul.f32 %v1667, -0.0768935
        %v1924 = vmul.f32 %v1668, -0.0768935
        %v1925 = vmul.f32 %v1669, -0.0768935
        %v1926 = vmul.f32 %v1670, -0.0768935
        %v1927 = vmul.f32 %v1671, -0.0768935
        %v1928 = vmul.f32 %v1672, -0.0768935
        %v1929 = vmul.f32 %v1673, -0.0768935
        %v1930 = vmul.f32 %v1674, -0.0768935
        %v1931 = vmul.f32 %v1675, -0.0768935
        %v1932 = vmul.f32 %v1676, -0.0768935
        %v1933 = vmul.f32 %v1677, -0.0768935
        %v1934 = vmul.f32 %v1678, -0.0768935
        %v1935 = vmul.f32 %v1679, -0.0768935
        %v1936 = vmul.f32 %v1680, -0.0768935
        %v1937 = vmul.f32 %v1681, -0.0768935
        %v1938 = vmul.f32 %v1682, -0.0768935
        %v1939 = vmul.f32 %v1683, -0.0768935
        %v1940 = vmul.f32 %v1684, -0.0768935
        %v1941 = vmul.f32 %v1685, -0.0768935
        %v1942 = vmul.f32 %v1686, -0.0768935
        %v1943 = vmul.f32 %v1687, -0.0768935
        %v1944 = vmul.f32 %v1688, -0.0768935
        %v1945 = vmul.f32 %v1689, -0.0768935
        %v1946 = vmul.f32 %v1690, -0.0768935
        %v1947 = vmul.f32 %v1691, -0.0768935
        %v1948 = vmul.f32 %v1692, -0.0768935
        %v1949 = vmul.f32 %v1693, -0.0768935
        %v1950 = vmul.f32 %v1694, -0.0768935
        %v1951 = vmul.f32 %v1695, -0.0768935
        %v1952 = vmul.f32 %v1696, -0.0768935
        %v1953 = vmul.f32 %v1697, -0.0768935
        %v1954 = vmul.f32 %v1698, -0.0768935
        %v1955 = vmul.f32 %v1699, -0.0768935
        %v1956 = vmul.f32 %v1700, -0.0768935
        %v1957 = vmul.f32 %v1701, -0.0768935
        %v1958 = vmul.f32 %v1702, -0.0768935
        %v1959 = vmul.f32 %v1703, -0.0768935
        %v1960 = vmul.f32 %v1704, -0.0768935
        %v1961 = vmul.f32 %v1705, -0.0768935
        %v1962 = vmul.f32 %v1706, -0.0768935
        %v1963 = vmul.f32 %v1707, -0.0768935
        %v1964 = vmul.f32 %v1708, -0.0768935
        %v1965 = vmul.f32 %v1709, -0.0768935
        %v1966 = vmul.f32 %v1710, -0.0768935
        %v1967 = vmul.f32 %v1711, -0.0768935
        %v1968 = vmul.f32 %v1712, -0.0768935
        %v1969 = vmul.f32 %v1713, -0.0768935
        %v1970 = vmul.f32 %v1714, -0.0768935
        %v1971 = vmul.f32 %v1715, -0.0768935
        %v1972 = vmul.f32 %v1716, -0.0768935
        %v1973 = vmul.f32 %v1717, -0.0768935
        %v1974 = vmul.f32 %v1718, -0.0768935
        %v1975 = vmul.f32 %v1719, -0.0768935
        %v1976 = vmul.f32 %v1720, -0.0768935
        %v1977 = vmul.f32 %v1721, -0.0768935
        %v1978 = vmul.f32 %v1722, -0.0768935
        %v1979 = vmul.f32 %v1723, -0.0768935
        %v1980 = vmul.f32 %v1724, -0.0768935
        %v1981 = vmul.f32 %v1725, -0.0768935
        %v1982 = vmul.f32 %v1726, -0.0768935
        %v1983 = vmul.f32 %v1727, -0.0768935
        %v1984 = vmul.f32 %v1728, -0.0768935
        %v1985 = vmul.f32 %v1729, -0.0768935
        %v1986 = vmul.f32 %v1730, -0.0768935
        %v1987 = vmul.f32 %v1731, -0.0768935
        %v1988 = vmul.f32 %v1732, -0.0768935
        %v1989 = vmul.f32 %v1733, -0.0768935
        %v1990 = vmul.f32 %v1734, -0.0768935
        %v1991 = vmul.f32 %v1735, -0.0768935
        %v1992 = vmul.f32 %v1736, -0.0768935
        %v1993 = vmul.f32 %v1737, -0.0768935
        %v1994 = vmul.f32 %v1738, -0.0768935
        %v1995 = vmul.f32 %v1739, -0.0768935
        %v1996 = vmul.f32 %v1740, -0.0768935
        %v1997 = vmul.f32 %v1741, -0.0768935
        %v1998 = vmul.f32 %v1742, -0.0768935
        %v1999 = vmul.f32 %v1743, -0.0768935
        %v2000 = vmul.f32 %v1744, -0.0768935
        %v2001 = vmul.f32 %v1745, -0.0768935
        %v2002 = vmul.f32 %v1746, -0.0768935
        %v2003 = vmul.f32 %v1747, -0.0768935
        %v2004 = vmul.f32 %v1748, -0.0768935
        %v2005 = vmul.f32 %v1749, -0.0768935
        %v2006 = vmul.f32 %v1750, -0.0768935
        %v2007 = vmul.f32 %v1751, -0.0768935
        %v2008 = vmul.f32 %v1752, -0.0768935
        %v2009 = vmul.f32 %v1753, -0.0768935
        %v2010 = vmul.f32 %v1754, -0.0768935
        %v2011 = vmul.f32 %v1755, -0.0768935
        %v2012 = vmul.f32 %v1756, -0.0768935
        %v2013 = vmul.f32 %v1757, -0.0768935
        %v2014 = vmul.f32 %v1758, -0.0768935
        %v2015 = vmul.f32 %v1759, -0.0768935
        %v2016 = vmul.f32 %v1760, -0.0768935
        %v2017 = vmul.f32 %v1761, -0.0768935
        %v2018 = vmul.f32 %v1762, -0.0768935
        %v2019 = vmul.f32 %v1763, -0.0768935
        %v2020 = vmul.f32 %v1764, -0.0768935
        %v2021 = vmul.f32 %v1765, -0.0768935
        %v2022 = vmul.f32 %v1766, -0.0768935
        %v2023 = vmul.f32 %v1767, -0.0768935
        %v2024 = vmul.f32 %v1768, -0.0768935
        %v2025 = vmul.f32 %v1769, -0.0768935
        %v2026 = vmul.f32 %v1770, -0.0768935
        %v2027 = vmul.f32 %v1771, -0.0768935
        %v2028 = vmul.f32 %v1772, -0.0768935
        %v2029 = vmul.f32 %v1773, -0.0768935
        %v2030 = vmul.f32 %v1774, -0.0768935
        %v2031 = vmul.f32 %v1775, -0.0768935
        %v2032 = vmul.f32 %v1776, -0.0768935
        %v2033 = vmul.f32 %v1777, -0.0768935
        %v2034 = vmul.f32 %v1778, -0.0768935
        %v2035 = vmul.f32 %v1779, -0.0768935
        %v2036 = vmul.f32 %v1780, -0.0768935
        %v2037 = vmul.f32 %v1781, -0.0768935
        %v2038 = vmul.f32 %v1782, -0.0768935
        %v2039 = vmul.f32 %v1783, -0.0768935
        %v2040 = vmul.f32 %v1784, 1.442695
        %v2041 = vpow.pop %v2040
        %v2042 = vmul.f32 %v1785, 1.442695
        %v2043 = vpow.pop %v2042
        %v2044 = vmul.f32 %v1786, 1.442695
        %v2045 = vpow.pop %v2044
        %v2046 = vmul.f32 %v1787, 1.442695
        %v2047 = vpow.pop %v2046
        %v2048 = vmul.f32 %v1788, 1.442695
        %v2049 = vpow.pop %v2048
        %v2050 = vmul.f32 %v1789, 1.442695
        %v2051 = vpow.pop %v2050
        %v2052 = vmul.f32 %v1790, 1.442695
        %v2053 = vpow.pop %v2052
        %v2054 = vmul.f32 %v1791, 1.442695
        %v2055 = vpow.pop %v2054
        %v2056 = vmul.f32 %v1792, 1.442695
        %v2057 = vpow.pop %v2056
        %v2058 = vmul.f32 %v1793, 1.442695
        %v2059 = vpow.pop %v2058
        %v2060 = vmul.f32 %v1794, 1.442695
        %v2061 = vpow.pop %v2060
        %v2062 = vmul.f32 %v1795, 1.442695
        %v2063 = vpow.pop %v2062
        %v2064 = vmul.f32 %v1796, 1.442695
        %v2065 = vpow.pop %v2064
        %v2066 = vmul.f32 %v1797, 1.442695
        %v2067 = vpow.pop %v2066
        %v2068 = vmul.f32 %v1798, 1.442695
        %v2069 = vpow.pop %v2068
        %v2070 = vmul.f32 %v1799, 1.442695
        %v2071 = vpow.pop %v2070
        %v2072 = vmul.f32 %v1800, 1.442695
        %v2073 = vpow.pop %v2072
        %v2074 = vmul.f32 %v1801, 1.442695
        %v2075 = vpow.pop %v2074
        %v2076 = vmul.f32 %v1802, 1.442695
        %v2077 = vpow.pop %v2076
        %v2078 = vmul.f32 %v1803, 1.442695
        %v2079 = vpow.pop %v2078
        %v2080 = vmul.f32 %v1804, 1.442695
        %v2081 = vpow.pop %v2080
        %v2082 = vmul.f32 %v1805, 1.442695
        %v2083 = vpow.pop %v2082
        %v2084 = vmul.f32 %v1806, 1.442695
        %v2085 = vpow.pop %v2084
        %v2086 = vmul.f32 %v1807, 1.442695
        %v2087 = vpow.pop %v2086
        %v2088 = vmul.f32 %v1808, 1.442695
        %v2089 = vpow.pop %v2088
        %v2090 = vmul.f32 %v1809, 1.442695
        %v2091 = vpow.pop %v2090
        %v2092 = vmul.f32 %v1810, 1.442695
        %v2093 = vpow.pop %v2092
        %v2094 = vmul.f32 %v1811, 1.442695
        %v2095 = vpow.pop %v2094
        %v2096 = vmul.f32 %v1812, 1.442695
        %v2097 = vpow.pop %v2096
        %v2098 = vmul.f32 %v1813, 1.442695
        %v2099 = vpow.pop %v2098
        %v2100 = vmul.f32 %v1814, 1.442695
        %v2101 = vpow.pop %v2100
        %v2102 = vmul.f32 %v1815, 1.442695
        %v2103 = vpow.pop %v2102
        %v2104 = vmul.f32 %v1816, 1.442695
        %v2105 = vpow.pop %v2104
        %v2106 = vmul.f32 %v1817, 1.442695
        %v2107 = vpow.pop %v2106
        %v2108 = vmul.f32 %v1818, 1.442695
        %v2109 = vpow.pop %v2108
        %v2110 = vmul.f32 %v1819, 1.442695
        %v2111 = vpow.pop %v2110
        %v2112 = vmul.f32 %v1820, 1.442695
        %v2113 = vpow.pop %v2112
        %v2114 = vmul.f32 %v1821, 1.442695
        %v2115 = vpow.pop %v2114
        %v2116 = vmul.f32 %v1822, 1.442695
        %v2117 = vpow.pop %v2116
        %v2118 = vmul.f32 %v1823, 1.442695
        %v2119 = vpow.pop %v2118
        %v2120 = vmul.f32 %v1824, 1.442695
        %v2121 = vpow.pop %v2120
        %v2122 = vmul.f32 %v1825, 1.442695
        %v2123 = vpow.pop %v2122
        %v2124 = vmul.f32 %v1826, 1.442695
        %v2125 = vpow.pop %v2124
        %v2126 = vmul.f32 %v1827, 1.442695
        %v2127 = vpow.pop %v2126
        %v2128 = vmul.f32 %v1828, 1.442695
        %v2129 = vpow.pop %v2128
        %v2130 = vmul.f32 %v1829, 1.442695
        %v2131 = vpow.pop %v2130
        %v2132 = vmul.f32 %v1830, 1.442695
        %v2133 = vpow.pop %v2132
        %v2134 = vmul.f32 %v1831, 1.442695
        %v2135 = vpow.pop %v2134
        %v2136 = vmul.f32 %v1832, 1.442695
        %v2137 = vpow.pop %v2136
        %v2138 = vmul.f32 %v1833, 1.442695
        %v2139 = vpow.pop %v2138
        %v2140 = vmul.f32 %v1834, 1.442695
        %v2141 = vpow.pop %v2140
        %v2142 = vmul.f32 %v1835, 1.442695
        %v2143 = vpow.pop %v2142
        %v2144 = vmul.f32 %v1836, 1.442695
        %v2145 = vpow.pop %v2144
        %v2146 = vmul.f32 %v1837, 1.442695
        %v2147 = vpow.pop %v2146
        %v2148 = vmul.f32 %v1838, 1.442695
        %v2149 = vpow.pop %v2148
        %v2150 = vmul.f32 %v1839, 1.442695
        %v2151 = vpow.pop %v2150
        %v2152 = vmul.f32 %v1840, 1.442695
        %v2153 = vpow.pop %v2152
        %v2154 = vmul.f32 %v1841, 1.442695
        %v2155 = vpow.pop %v2154
        %v2156 = vmul.f32 %v1842, 1.442695
        %v2157 = vpow.pop %v2156
        %v2158 = vmul.f32 %v1843, 1.442695
        %v2159 = vpow.pop %v2158
        %v2160 = vmul.f32 %v1844, 1.442695
        %v2161 = vpow.pop %v2160
        %v2162 = vmul.f32 %v1845, 1.442695
        %v2163 = vpow.pop %v2162
        %v2164 = vmul.f32 %v1846, 1.442695
        %v2165 = vpow.pop %v2164
        %v2166 = vmul.f32 %v1847, 1.442695
        %v2167 = vpow.pop %v2166
        %v2168 = vmul.f32 %v1848, 1.442695
        %v2169 = vpow.pop %v2168
        %v2170 = vmul.f32 %v1849, 1.442695
        %v2171 = vpow.pop %v2170
        %v2172 = vmul.f32 %v1850, 1.442695
        %v2173 = vpow.pop %v2172
        %v2174 = vmul.f32 %v1851, 1.442695
        %v2175 = vpow.pop %v2174
        %v2176 = vmul.f32 %v1852, 1.442695
        %v2177 = vpow.pop %v2176
        %v2178 = vmul.f32 %v1853, 1.442695
        %v2179 = vpow.pop %v2178
        %v2180 = vmul.f32 %v1854, 1.442695
        %v2181 = vpow.pop %v2180
        %v2182 = vmul.f32 %v1855, 1.442695
        %v2183 = vpow.pop %v2182
        %v2184 = vmul.f32 %v1856, 1.442695
        %v2185 = vpow.pop %v2184
        %v2186 = vmul.f32 %v1857, 1.442695
        %v2187 = vpow.pop %v2186
        %v2188 = vmul.f32 %v1858, 1.442695
        %v2189 = vpow.pop %v2188
        %v2190 = vmul.f32 %v1859, 1.442695
        %v2191 = vpow.pop %v2190
        %v2192 = vmul.f32 %v1860, 1.442695
        %v2193 = vpow.pop %v2192
        %v2194 = vmul.f32 %v1861, 1.442695
        %v2195 = vpow.pop %v2194
        %v2196 = vmul.f32 %v1862, 1.442695
        %v2197 = vpow.pop %v2196
        %v2198 = vmul.f32 %v1863, 1.442695
        %v2199 = vpow.pop %v2198
        %v2200 = vmul.f32 %v1864, 1.442695
        %v2201 = vpow.pop %v2200
        %v2202 = vmul.f32 %v1865, 1.442695
        %v2203 = vpow.pop %v2202
        %v2204 = vmul.f32 %v1866, 1.442695
        %v2205 = vpow.pop %v2204
        %v2206 = vmul.f32 %v1867, 1.442695
        %v2207 = vpow.pop %v2206
        %v2208 = vmul.f32 %v1868, 1.442695
        %v2209 = vpow.pop %v2208
        %v2210 = vmul.f32 %v1869, 1.442695
        %v2211 = vpow.pop %v2210
        %v2212 = vmul.f32 %v1870, 1.442695
        %v2213 = vpow.pop %v2212
        %v2214 = vmul.f32 %v1871, 1.442695
        %v2215 = vpow.pop %v2214
        %v2216 = vmul.f32 %v1872, 1.442695
        %v2217 = vpow.pop %v2216
        %v2218 = vmul.f32 %v1873, 1.442695
        %v2219 = vpow.pop %v2218
        %v2220 = vmul.f32 %v1874, 1.442695
        %v2221 = vpow.pop %v2220
        %v2222 = vmul.f32 %v1875, 1.442695
        %v2223 = vpow.pop %v2222
        %v2224 = vmul.f32 %v1876, 1.442695
        %v2225 = vpow.pop %v2224
        %v2226 = vmul.f32 %v1877, 1.442695
        %v2227 = vpow.pop %v2226
        %v2228 = vmul.f32 %v1878, 1.442695
        %v2229 = vpow.pop %v2228
        %v2230 = vmul.f32 %v1879, 1.442695
        %v2231 = vpow.pop %v2230
        %v2232 = vmul.f32 %v1880, 1.442695
        %v2233 = vpow.pop %v2232
        %v2234 = vmul.f32 %v1881, 1.442695
        %v2235 = vpow.pop %v2234
        %v2236 = vmul.f32 %v1882, 1.442695
        %v2237 = vpow.pop %v2236
        %v2238 = vmul.f32 %v1883, 1.442695
        %v2239 = vpow.pop %v2238
        %v2240 = vmul.f32 %v1884, 1.442695
        %v2241 = vpow.pop %v2240
        %v2242 = vmul.f32 %v1885, 1.442695
        %v2243 = vpow.pop %v2242
        %v2244 = vmul.f32 %v1886, 1.442695
        %v2245 = vpow.pop %v2244
        %v2246 = vmul.f32 %v1887, 1.442695
        %v2247 = vpow.pop %v2246
        %v2248 = vmul.f32 %v1888, 1.442695
        %v2249 = vpow.pop %v2248
        %v2250 = vmul.f32 %v1889, 1.442695
        %v2251 = vpow.pop %v2250
        %v2252 = vmul.f32 %v1890, 1.442695
        %v2253 = vpow.pop %v2252
        %v2254 = vmul.f32 %v1891, 1.442695
        %v2255 = vpow.pop %v2254
        %v2256 = vmul.f32 %v1892, 1.442695
        %v2257 = vpow.pop %v2256
        %v2258 = vmul.f32 %v1893, 1.442695
        %v2259 = vpow.pop %v2258
        %v2260 = vmul.f32 %v1894, 1.442695
        %v2261 = vpow.pop %v2260
        %v2262 = vmul.f32 %v1895, 1.442695
        %v2263 = vpow.pop %v2262
        %v2264 = vmul.f32 %v1896, 1.442695
        %v2265 = vpow.pop %v2264
        %v2266 = vmul.f32 %v1897, 1.442695
        %v2267 = vpow.pop %v2266
        %v2268 = vmul.f32 %v1898, 1.442695
        %v2269 = vpow.pop %v2268
        %v2270 = vmul.f32 %v1899, 1.442695
        %v2271 = vpow.pop %v2270
        %v2272 = vmul.f32 %v1900, 1.442695
        %v2273 = vpow.pop %v2272
        %v2274 = vmul.f32 %v1901, 1.442695
        %v2275 = vpow.pop %v2274
        %v2276 = vmul.f32 %v1902, 1.442695
        %v2277 = vpow.pop %v2276
        %v2278 = vmul.f32 %v1903, 1.442695
        %v2279 = vpow.pop %v2278
        %v2280 = vmul.f32 %v1904, 1.442695
        %v2281 = vpow.pop %v2280
        %v2282 = vmul.f32 %v1905, 1.442695
        %v2283 = vpow.pop %v2282
        %v2284 = vmul.f32 %v1906, 1.442695
        %v2285 = vpow.pop %v2284
        %v2286 = vmul.f32 %v1907, 1.442695
        %v2287 = vpow.pop %v2286
        %v2288 = vmul.f32 %v1908, 1.442695
        %v2289 = vpow.pop %v2288
        %v2290 = vmul.f32 %v1909, 1.442695
        %v2291 = vpow.pop %v2290
        %v2292 = vmul.f32 %v1910, 1.442695
        %v2293 = vpow.pop %v2292
        %v2294 = vmul.f32 %v1911, 1.442695
        %v2295 = vpow.pop %v2294
        %v2296 = vmul.f32 %v1912, 1.442695
        %v2297 = vpow.pop %v2296
        %v2298 = vmul.f32 %v1913, 1.442695
        %v2299 = vpow.pop %v2298
        %v2300 = vmul.f32 %v1914, 1.442695
        %v2301 = vpow.pop %v2300
        %v2302 = vmul.f32 %v1915, 1.442695
        %v2303 = vpow.pop %v2302
        %v2304 = vmul.f32 %v1916, 1.442695
        %v2305 = vpow.pop %v2304
        %v2306 = vmul.f32 %v1917, 1.442695
        %v2307 = vpow.pop %v2306
        %v2308 = vmul.f32 %v1918, 1.442695
        %v2309 = vpow.pop %v2308
        %v2310 = vmul.f32 %v1919, 1.442695
        %v2311 = vpow.pop %v2310
        %v2312 = vmul.f32 %v1920, 1.442695
        %v2313 = vpow.pop %v2312
        %v2314 = vmul.f32 %v1921, 1.442695
        %v2315 = vpow.pop %v2314
        %v2316 = vmul.f32 %v1922, 1.442695
        %v2317 = vpow.pop %v2316
        %v2318 = vmul.f32 %v1923, 1.442695
        %v2319 = vpow.pop %v2318
        %v2320 = vmul.f32 %v1924, 1.442695
        %v2321 = vpow.pop %v2320
        %v2322 = vmul.f32 %v1925, 1.442695
        %v2323 = vpow.pop %v2322
        %v2324 = vmul.f32 %v1926, 1.442695
        %v2325 = vpow.pop %v2324
        %v2326 = vmul.f32 %v1927, 1.442695
        %v2327 = vpow.pop %v2326
        %v2328 = vmul.f32 %v1928, 1.442695
        %v2329 = vpow.pop %v2328
        %v2330 = vmul.f32 %v1929, 1.442695
        %v2331 = vpow.pop %v2330
        %v2332 = vmul.f32 %v1930, 1.442695
        %v2333 = vpow.pop %v2332
        %v2334 = vmul.f32 %v1931, 1.442695
        %v2335 = vpow.pop %v2334
        %v2336 = vmul.f32 %v1932, 1.442695
        %v2337 = vpow.pop %v2336
        %v2338 = vmul.f32 %v1933, 1.442695
        %v2339 = vpow.pop %v2338
        %v2340 = vmul.f32 %v1934, 1.442695
        %v2341 = vpow.pop %v2340
        %v2342 = vmul.f32 %v1935, 1.442695
        %v2343 = vpow.pop %v2342
        %v2344 = vmul.f32 %v1936, 1.442695
        %v2345 = vpow.pop %v2344
        %v2346 = vmul.f32 %v1937, 1.442695
        %v2347 = vpow.pop %v2346
        %v2348 = vmul.f32 %v1938, 1.442695
        %v2349 = vpow.pop %v2348
        %v2350 = vmul.f32 %v1939, 1.442695
        %v2351 = vpow.pop %v2350
        %v2352 = vmul.f32 %v1940, 1.442695
        %v2353 = vpow.pop %v2352
        %v2354 = vmul.f32 %v1941, 1.442695
        %v2355 = vpow.pop %v2354
        %v2356 = vmul.f32 %v1942, 1.442695
        %v2357 = vpow.pop %v2356
        %v2358 = vmul.f32 %v1943, 1.442695
        %v2359 = vpow.pop %v2358
        %v2360 = vmul.f32 %v1944, 1.442695
        %v2361 = vpow.pop %v2360
        %v2362 = vmul.f32 %v1945, 1.442695
        %v2363 = vpow.pop %v2362
        %v2364 = vmul.f32 %v1946, 1.442695
        %v2365 = vpow.pop %v2364
        %v2366 = vmul.f32 %v1947, 1.442695
        %v2367 = vpow.pop %v2366
        %v2368 = vmul.f32 %v1948, 1.442695
        %v2369 = vpow.pop %v2368
        %v2370 = vmul.f32 %v1949, 1.442695
        %v2371 = vpow.pop %v2370
        %v2372 = vmul.f32 %v1950, 1.442695
        %v2373 = vpow.pop %v2372
        %v2374 = vmul.f32 %v1951, 1.442695
        %v2375 = vpow.pop %v2374
        %v2376 = vmul.f32 %v1952, 1.442695
        %v2377 = vpow.pop %v2376
        %v2378 = vmul.f32 %v1953, 1.442695
        %v2379 = vpow.pop %v2378
        %v2380 = vmul.f32 %v1954, 1.442695
        %v2381 = vpow.pop %v2380
        %v2382 = vmul.f32 %v1955, 1.442695
        %v2383 = vpow.pop %v2382
        %v2384 = vmul.f32 %v1956, 1.442695
        %v2385 = vpow.pop %v2384
        %v2386 = vmul.f32 %v1957, 1.442695
        %v2387 = vpow.pop %v2386
        %v2388 = vmul.f32 %v1958, 1.442695
        %v2389 = vpow.pop %v2388
        %v2390 = vmul.f32 %v1959, 1.442695
        %v2391 = vpow.pop %v2390
        %v2392 = vmul.f32 %v1960, 1.442695
        %v2393 = vpow.pop %v2392
        %v2394 = vmul.f32 %v1961, 1.442695
        %v2395 = vpow.pop %v2394
        %v2396 = vmul.f32 %v1962, 1.442695
        %v2397 = vpow.pop %v2396
        %v2398 = vmul.f32 %v1963, 1.442695
        %v2399 = vpow.pop %v2398
        %v2400 = vmul.f32 %v1964, 1.442695
        %v2401 = vpow.pop %v2400
        %v2402 = vmul.f32 %v1965, 1.442695
        %v2403 = vpow.pop %v2402
        %v2404 = vmul.f32 %v1966, 1.442695
        %v2405 = vpow.pop %v2404
        %v2406 = vmul.f32 %v1967, 1.442695
        %v2407 = vpow.pop %v2406
        %v2408 = vmul.f32 %v1968, 1.442695
        %v2409 = vpow.pop %v2408
        %v2410 = vmul.f32 %v1969, 1.442695
        %v2411 = vpow.pop %v2410
        %v2412 = vmul.f32 %v1970, 1.442695
        %v2413 = vpow.pop %v2412
        %v2414 = vmul.f32 %v1971, 1.442695
        %v2415 = vpow.pop %v2414
        %v2416 = vmul.f32 %v1972, 1.442695
        %v2417 = vpow.pop %v2416
        %v2418 = vmul.f32 %v1973, 1.442695
        %v2419 = vpow.pop %v2418
        %v2420 = vmul.f32 %v1974, 1.442695
        %v2421 = vpow.pop %v2420
        %v2422 = vmul.f32 %v1975, 1.442695
        %v2423 = vpow.pop %v2422
        %v2424 = vmul.f32 %v1976, 1.442695
        %v2425 = vpow.pop %v2424
        %v2426 = vmul.f32 %v1977, 1.442695
        %v2427 = vpow.pop %v2426
        %v2428 = vmul.f32 %v1978, 1.442695
        %v2429 = vpow.pop %v2428
        %v2430 = vmul.f32 %v1979, 1.442695
        %v2431 = vpow.pop %v2430
        %v2432 = vmul.f32 %v1980, 1.442695
        %v2433 = vpow.pop %v2432
        %v2434 = vmul.f32 %v1981, 1.442695
        %v2435 = vpow.pop %v2434
        %v2436 = vmul.f32 %v1982, 1.442695
        %v2437 = vpow.pop %v2436
        %v2438 = vmul.f32 %v1983, 1.442695
        %v2439 = vpow.pop %v2438
        %v2440 = vmul.f32 %v1984, 1.442695
        %v2441 = vpow.pop %v2440
        %v2442 = vmul.f32 %v1985, 1.442695
        %v2443 = vpow.pop %v2442
        %v2444 = vmul.f32 %v1986, 1.442695
        %v2445 = vpow.pop %v2444
        %v2446 = vmul.f32 %v1987, 1.442695
        %v2447 = vpow.pop %v2446
        %v2448 = vmul.f32 %v1988, 1.442695
        %v2449 = vpow.pop %v2448
        %v2450 = vmul.f32 %v1989, 1.442695
        %v2451 = vpow.pop %v2450
        %v2452 = vmul.f32 %v1990, 1.442695
        %v2453 = vpow.pop %v2452
        %v2454 = vmul.f32 %v1991, 1.442695
        %v2455 = vpow.pop %v2454
        %v2456 = vmul.f32 %v1992, 1.442695
        %v2457 = vpow.pop %v2456
        %v2458 = vmul.f32 %v1993, 1.442695
        %v2459 = vpow.pop %v2458
        %v2460 = vmul.f32 %v1994, 1.442695
        %v2461 = vpow.pop %v2460
        %v2462 = vmul.f32 %v1995, 1.442695
        %v2463 = vpow.pop %v2462
        %v2464 = vmul.f32 %v1996, 1.442695
        %v2465 = vpow.pop %v2464
        %v2466 = vmul.f32 %v1997, 1.442695
        %v2467 = vpow.pop %v2466
        %v2468 = vmul.f32 %v1998, 1.442695
        %v2469 = vpow.pop %v2468
        %v2470 = vmul.f32 %v1999, 1.442695
        %v2471 = vpow.pop %v2470
        %v2472 = vmul.f32 %v2000, 1.442695
        %v2473 = vpow.pop %v2472
        %v2474 = vmul.f32 %v2001, 1.442695
        %v2475 = vpow.pop %v2474
        %v2476 = vmul.f32 %v2002, 1.442695
        %v2477 = vpow.pop %v2476
        %v2478 = vmul.f32 %v2003, 1.442695
        %v2479 = vpow.pop %v2478
        %v2480 = vmul.f32 %v2004, 1.442695
        %v2481 = vpow.pop %v2480
        %v2482 = vmul.f32 %v2005, 1.442695
        %v2483 = vpow.pop %v2482
        %v2484 = vmul.f32 %v2006, 1.442695
        %v2485 = vpow.pop %v2484
        %v2486 = vmul.f32 %v2007, 1.442695
        %v2487 = vpow.pop %v2486
        %v2488 = vmul.f32 %v2008, 1.442695
        %v2489 = vpow.pop %v2488
        %v2490 = vmul.f32 %v2009, 1.442695
        %v2491 = vpow.pop %v2490
        %v2492 = vmul.f32 %v2010, 1.442695
        %v2493 = vpow.pop %v2492
        %v2494 = vmul.f32 %v2011, 1.442695
        %v2495 = vpow.pop %v2494
        %v2496 = vmul.f32 %v2012, 1.442695
        %v2497 = vpow.pop %v2496
        %v2498 = vmul.f32 %v2013, 1.442695
        %v2499 = vpow.pop %v2498
        %v2500 = vmul.f32 %v2014, 1.442695
        %v2501 = vpow.pop %v2500
        %v2502 = vmul.f32 %v2015, 1.442695
        %v2503 = vpow.pop %v2502
        %v2504 = vmul.f32 %v2016, 1.442695
        %v2505 = vpow.pop %v2504
        %v2506 = vmul.f32 %v2017, 1.442695
        %v2507 = vpow.pop %v2506
        %v2508 = vmul.f32 %v2018, 1.442695
        %v2509 = vpow.pop %v2508
        %v2510 = vmul.f32 %v2019, 1.442695
        %v2511 = vpow.pop %v2510
        %v2512 = vmul.f32 %v2020, 1.442695
        %v2513 = vpow.pop %v2512
        %v2514 = vmul.f32 %v2021, 1.442695
        %v2515 = vpow.pop %v2514
        %v2516 = vmul.f32 %v2022, 1.442695
        %v2517 = vpow.pop %v2516
        %v2518 = vmul.f32 %v2023, 1.442695
        %v2519 = vpow.pop %v2518
        %v2520 = vmul.f32 %v2024, 1.442695
        %v2521 = vpow.pop %v2520
        %v2522 = vmul.f32 %v2025, 1.442695
        %v2523 = vpow.pop %v2522
        %v2524 = vmul.f32 %v2026, 1.442695
        %v2525 = vpow.pop %v2524
        %v2526 = vmul.f32 %v2027, 1.442695
        %v2527 = vpow.pop %v2526
        %v2528 = vmul.f32 %v2028, 1.442695
        %v2529 = vpow.pop %v2528
        %v2530 = vmul.f32 %v2029, 1.442695
        %v2531 = vpow.pop %v2530
        %v2532 = vmul.f32 %v2030, 1.442695
        %v2533 = vpow.pop %v2532
        %v2534 = vmul.f32 %v2031, 1.442695
        %v2535 = vpow.pop %v2534
        %v2536 = vmul.f32 %v2032, 1.442695
        %v2537 = vpow.pop %v2536
        %v2538 = vmul.f32 %v2033, 1.442695
        %v2539 = vpow.pop %v2538
        %v2540 = vmul.f32 %v2034, 1.442695
        %v2541 = vpow.pop %v2540
        %v2542 = vmul.f32 %v2035, 1.442695
        %v2543 = vpow.pop %v2542
        %v2544 = vmul.f32 %v2036, 1.442695
        %v2545 = vpow.pop %v2544
        %v2546 = vmul.f32 %v2037, 1.442695
        %v2547 = vpow.pop %v2546
        %v2548 = vmul.f32 %v2038, 1.442695
        %v2549 = vpow.pop %v2548
        %v2550 = vmul.f32 %v2039, 1.442695
        %v2551 = vpow.pop %v2550
        %v2552 = vpack.c.bf16 %v2043, %v2041
        %v2553 = vpack.c.bf16 %v2047, %v2045
        %v2554 = vpack.c.bf16 %v2051, %v2049
        %v2555 = vpack.c.bf16 %v2055, %v2053
        %v2556 = vpack.c.bf16 %v2059, %v2057
        %v2557 = vpack.c.bf16 %v2063, %v2061
        %v2558 = vpack.c.bf16 %v2067, %v2065
        %v2559 = vpack.c.bf16 %v2071, %v2069
        %v2560 = vpack.c.bf16 %v2075, %v2073
        %v2561 = vpack.c.bf16 %v2079, %v2077
        %v2562 = vpack.c.bf16 %v2083, %v2081
        %v2563 = vpack.c.bf16 %v2087, %v2085
        %v2564 = vpack.c.bf16 %v2091, %v2089
        %v2565 = vpack.c.bf16 %v2095, %v2093
        %v2566 = vpack.c.bf16 %v2099, %v2097
        %v2567 = vpack.c.bf16 %v2103, %v2101
        %v2568 = vpack.c.bf16 %v2107, %v2105
        %v2569 = vpack.c.bf16 %v2111, %v2109
        %v2570 = vpack.c.bf16 %v2115, %v2113
        %v2571 = vpack.c.bf16 %v2119, %v2117
        %v2572 = vpack.c.bf16 %v2123, %v2121
        %v2573 = vpack.c.bf16 %v2127, %v2125
        %v2574 = vpack.c.bf16 %v2131, %v2129
        %v2575 = vpack.c.bf16 %v2135, %v2133
        %v2576 = vpack.c.bf16 %v2139, %v2137
        %v2577 = vpack.c.bf16 %v2143, %v2141
        %v2578 = vpack.c.bf16 %v2147, %v2145
        %v2579 = vpack.c.bf16 %v2151, %v2149
        %v2580 = vpack.c.bf16 %v2155, %v2153
        %v2581 = vpack.c.bf16 %v2159, %v2157
        %v2582 = vpack.c.bf16 %v2163, %v2161
        %v2583 = vpack.c.bf16 %v2167, %v2165
        %v2584 = vpack.c.bf16 %v2171, %v2169
        %v2585 = vpack.c.bf16 %v2175, %v2173
        %v2586 = vpack.c.bf16 %v2179, %v2177
        %v2587 = vpack.c.bf16 %v2183, %v2181
        %v2588 = vpack.c.bf16 %v2187, %v2185
        %v2589 = vpack.c.bf16 %v2191, %v2189
        %v2590 = vpack.c.bf16 %v2195, %v2193
        %v2591 = vpack.c.bf16 %v2199, %v2197
        %v2592 = vpack.c.bf16 %v2203, %v2201
        %v2593 = vpack.c.bf16 %v2207, %v2205
        %v2594 = vpack.c.bf16 %v2211, %v2209
        %v2595 = vpack.c.bf16 %v2215, %v2213
        %v2596 = vpack.c.bf16 %v2219, %v2217
        %v2597 = vpack.c.bf16 %v2223, %v2221
        %v2598 = vpack.c.bf16 %v2227, %v2225
        %v2599 = vpack.c.bf16 %v2231, %v2229
        %v2600 = vpack.c.bf16 %v2235, %v2233
        %v2601 = vpack.c.bf16 %v2239, %v2237
        %v2602 = vpack.c.bf16 %v2243, %v2241
        %v2603 = vpack.c.bf16 %v2247, %v2245
        %v2604 = vpack.c.bf16 %v2251, %v2249
        %v2605 = vpack.c.bf16 %v2255, %v2253
        %v2606 = vpack.c.bf16 %v2259, %v2257
        %v2607 = vpack.c.bf16 %v2263, %v2261
        %v2608 = vpack.c.bf16 %v2267, %v2265
        %v2609 = vpack.c.bf16 %v2271, %v2269
        %v2610 = vpack.c.bf16 %v2275, %v2273
        %v2611 = vpack.c.bf16 %v2279, %v2277
        %v2612 = vpack.c.bf16 %v2283, %v2281
        %v2613 = vpack.c.bf16 %v2287, %v2285
        %v2614 = vpack.c.bf16 %v2291, %v2289
        %v2615 = vpack.c.bf16 %v2295, %v2293
        %v2616 = vpack.c.bf16 %v2299, %v2297
        %v2617 = vpack.c.bf16 %v2303, %v2301
        %v2618 = vpack.c.bf16 %v2307, %v2305
        %v2619 = vpack.c.bf16 %v2311, %v2309
        %v2620 = vpack.c.bf16 %v2315, %v2313
        %v2621 = vpack.c.bf16 %v2319, %v2317
        %v2622 = vpack.c.bf16 %v2323, %v2321
        %v2623 = vpack.c.bf16 %v2327, %v2325
        %v2624 = vpack.c.bf16 %v2331, %v2329
        %v2625 = vpack.c.bf16 %v2335, %v2333
        %v2626 = vpack.c.bf16 %v2339, %v2337
        %v2627 = vpack.c.bf16 %v2343, %v2341
        %v2628 = vpack.c.bf16 %v2347, %v2345
        %v2629 = vpack.c.bf16 %v2351, %v2349
        %v2630 = vpack.c.bf16 %v2355, %v2353
        %v2631 = vpack.c.bf16 %v2359, %v2357
        %v2632 = vpack.c.bf16 %v2363, %v2361
        %v2633 = vpack.c.bf16 %v2367, %v2365
        %v2634 = vpack.c.bf16 %v2371, %v2369
        %v2635 = vpack.c.bf16 %v2375, %v2373
        %v2636 = vpack.c.bf16 %v2379, %v2377
        %v2637 = vpack.c.bf16 %v2383, %v2381
        %v2638 = vpack.c.bf16 %v2387, %v2385
        %v2639 = vpack.c.bf16 %v2391, %v2389
        %v2640 = vpack.c.bf16 %v2395, %v2393
        %v2641 = vpack.c.bf16 %v2399, %v2397
        %v2642 = vpack.c.bf16 %v2403, %v2401
        %v2643 = vpack.c.bf16 %v2407, %v2405
        %v2644 = vpack.c.bf16 %v2411, %v2409
        %v2645 = vpack.c.bf16 %v2415, %v2413
        %v2646 = vpack.c.bf16 %v2419, %v2417
        %v2647 = vpack.c.bf16 %v2423, %v2421
        %v2648 = vpack.c.bf16 %v2427, %v2425
        %v2649 = vpack.c.bf16 %v2431, %v2429
        %v2650 = vpack.c.bf16 %v2435, %v2433
        %v2651 = vpack.c.bf16 %v2439, %v2437
        %v2652 = vpack.c.bf16 %v2443, %v2441
        %v2653 = vpack.c.bf16 %v2447, %v2445
        %v2654 = vpack.c.bf16 %v2451, %v2449
        %v2655 = vpack.c.bf16 %v2455, %v2453
        %v2656 = vpack.c.bf16 %v2459, %v2457
        %v2657 = vpack.c.bf16 %v2463, %v2461
        %v2658 = vpack.c.bf16 %v2467, %v2465
        %v2659 = vpack.c.bf16 %v2471, %v2469
        %v2660 = vpack.c.bf16 %v2475, %v2473
        %v2661 = vpack.c.bf16 %v2479, %v2477
        %v2662 = vpack.c.bf16 %v2483, %v2481
        %v2663 = vpack.c.bf16 %v2487, %v2485
        %v2664 = vpack.c.bf16 %v2491, %v2489
        %v2665 = vpack.c.bf16 %v2495, %v2493
        %v2666 = vpack.c.bf16 %v2499, %v2497
        %v2667 = vpack.c.bf16 %v2503, %v2501
        %v2668 = vpack.c.bf16 %v2507, %v2505
        %v2669 = vpack.c.bf16 %v2511, %v2509
        %v2670 = vpack.c.bf16 %v2515, %v2513
        %v2671 = vpack.c.bf16 %v2519, %v2517
        %v2672 = vpack.c.bf16 %v2523, %v2521
        %v2673 = vpack.c.bf16 %v2527, %v2525
        %v2674 = vpack.c.bf16 %v2531, %v2529
        %v2675 = vpack.c.bf16 %v2535, %v2533
        %v2676 = vpack.c.bf16 %v2539, %v2537
        %v2677 = vpack.c.bf16 %v2543, %v2541
        %v2678 = vpack.c.bf16 %v2547, %v2545
        %v2679 = vpack.c.bf16 %v2551, %v2549
        %v2682 = vcombine.low %v194, %v195
        %v2683 = vcombine.high %v194, %v195
        %v2685 = vunpack.c.l.s4 1966171168
        %v2686 = vunpack.c.0.s8 %v2685
        %v2687 = vlaneseq
        %v2688 = vshrl.u32 %v2687, 7
        %v2689 = vsub.s32 %v2686, %v2688
        %v2690 = vrot.slane %v2682, %v2689
        %v2692 = vunpack.c.l.s4 1966171168
        %v2693 = vunpack.c.0.s8 %v2692
        %v2694 = vlaneseq
        %v2695 = vshrl.u32 %v2694, 7
        %v2696 = vsub.s32 %v2693, %v2695
        %v2697 = vrot.slane %v2683, %v2696
        %v2698 = vcombine.high %v2690, %v2690
        %v2699 = vcombine.high %v2697, %v2697
        %v2701 = vunpack.c.l.s4 1966171168
        %v2702 = vunpack.c.0.s8 %v2701
        %v2703 = vlaneseq
        %v2704 = vshrl.u32 %v2703, 7
        %v2705 = vsub.s32 %v2702, %v2704
        %v2706 = vrot.slane %v2690, %v2705
        %v2708 = vunpack.c.l.s4 1966171168
        %v2709 = vunpack.c.0.s8 %v2708
        %v2710 = vlaneseq
        %v2711 = vshrl.u32 %v2710, 7
        %v2712 = vsub.s32 %v2709, %v2711
        %v2713 = vrot.slane %v2697, %v2712
        %v2715 = vunpack.c.l.s4 1966171168
        %v2716 = vunpack.c.0.s8 %v2715
        %v2717 = vlaneseq
        %v2718 = vshrl.u32 %v2717, 7
        %v2719 = vsub.s32 %v2716, %v2718
        %v2720 = vrot.slane %v2698, %v2719
        %v2722 = vunpack.c.l.s4 1966171168
        %v2723 = vunpack.c.0.s8 %v2722
        %v2724 = vlaneseq
        %v2725 = vshrl.u32 %v2724, 7
        %v2726 = vsub.s32 %v2723, %v2725
        %v2727 = vrot.slane %v2699, %v2726
        %v2728 = vcombine.high %v2706, %v2706
        %v2729 = vcombine.high %v2713, %v2713
        %v2730 = vcombine.high %v2720, %v2720
        %v2731 = vcombine.high %v2727, %v2727
        %v2732 = vlaneseq
        %v2733 = vshrl.u32 %v2732, 7
        %v2734 = vsub.s32 0, %v2733
        %v2735 = vrot.slane %v2706, %v2734
        %v2736 = vlaneseq
        %v2737 = vshrl.u32 %v2736, 7
        %v2738 = vsub.s32 1, %v2737
        %v2739 = vrot.slane %v2706, %v2738
        %v2740 = vlaneseq
        %v2741 = vshrl.u32 %v2740, 7
        %v2742 = vsub.s32 0, %v2741
        %v2743 = vrot.slane %v2720, %v2742
        %v2744 = vlaneseq
        %v2745 = vshrl.u32 %v2744, 7
        %v2746 = vsub.s32 1, %v2745
        %v2747 = vrot.slane %v2720, %v2746
        %v2748 = vlaneseq
        %v2749 = vshrl.u32 %v2748, 7
        %v2750 = vsub.s32 0, %v2749
        %v2751 = vrot.slane %v2728, %v2750
        %v2752 = vlaneseq
        %v2753 = vshrl.u32 %v2752, 7
        %v2754 = vsub.s32 1, %v2753
        %v2755 = vrot.slane %v2728, %v2754
        %v2756 = vlaneseq
        %v2757 = vshrl.u32 %v2756, 7
        %v2758 = vsub.s32 0, %v2757
        %v2759 = vrot.slane %v2730, %v2758
        %v2760 = vlaneseq
        %v2761 = vshrl.u32 %v2760, 7
        %v2762 = vsub.s32 1, %v2761
        %v2763 = vrot.slane %v2730, %v2762
        %v2764 = vlaneseq
        %v2765 = vshrl.u32 %v2764, 7
        %v2766 = vsub.s32 0, %v2765
        %v2767 = vrot.slane %v2713, %v2766
        %v2768 = vlaneseq
        %v2769 = vshrl.u32 %v2768, 7
        %v2770 = vsub.s32 1, %v2769
        %v2771 = vrot.slane %v2713, %v2770
        %v2772 = vlaneseq
        %v2773 = vshrl.u32 %v2772, 7
        %v2774 = vsub.s32 0, %v2773
        %v2775 = vrot.slane %v2727, %v2774
        %v2776 = vlaneseq
        %v2777 = vshrl.u32 %v2776, 7
        %v2778 = vsub.s32 1, %v2777
        %v2779 = vrot.slane %v2727, %v2778
        %v2780 = vlaneseq
        %v2781 = vshrl.u32 %v2780, 7
        %v2782 = vsub.s32 0, %v2781
        %v2783 = vrot.slane %v2729, %v2782
        %v2784 = vlaneseq
        %v2785 = vshrl.u32 %v2784, 7
        %v2786 = vsub.s32 1, %v2785
        %v2787 = vrot.slane %v2729, %v2786
        %v2788 = vlaneseq
        %v2789 = vshrl.u32 %v2788, 7
        %v2790 = vsub.s32 0, %v2789
        %v2791 = vrot.slane %v2731, %v2790
        %v2792 = vlaneseq
        %v2793 = vshrl.u32 %v2792, 7
        %v2794 = vsub.s32 1, %v2793
        %v2795 = vrot.slane %v2731, %v2794
        %vm2812 = vcmp.eq.f32.partialorder %v2735, %v181
        %vm2813 = vcmp.eq.f32.partialorder %v2739, %v181
        %vm2814 = vcmp.eq.f32.partialorder %v2743, %v181
        %vm2815 = vcmp.eq.f32.partialorder %v2747, %v181
        %vm2816 = vcmp.eq.f32.partialorder %v2751, %v181
        %vm2817 = vcmp.eq.f32.partialorder %v2755, %v181
        %vm2818 = vcmp.eq.f32.partialorder %v2759, %v181
        %vm2819 = vcmp.eq.f32.partialorder %v2763, %v181
        %vm2820 = vcmp.eq.f32.partialorder %v2767, %v181
        %vm2821 = vcmp.eq.f32.partialorder %v2771, %v181
        %vm2822 = vcmp.eq.f32.partialorder %v2775, %v181
        %vm2823 = vcmp.eq.f32.partialorder %v2779, %v181
        %vm2824 = vcmp.eq.f32.partialorder %v2783, %v181
        %vm2825 = vcmp.eq.f32.partialorder %v2787, %v181
        %vm2826 = vcmp.eq.f32.partialorder %v2791, %v181
        %vm2827 = vcmp.eq.f32.partialorder %v2795, %v181
        %v2828 = vsel %vm2812, 1, 0
        %v2829 = vsel %vm2813, 1, 0
        %v2830 = vsel %vm2814, 1, 0
        %v2831 = vsel %vm2815, 1, 0
        %v2832 = vsel %vm2816, 1, 0
        %v2833 = vsel %vm2817, 1, 0
        %v2834 = vsel %vm2818, 1, 0
        %v2835 = vsel %vm2819, 1, 0
        %v2836 = vsel %vm2820, 1, 0
        %v2837 = vsel %vm2821, 1, 0
        %v2838 = vsel %vm2822, 1, 0
        %v2839 = vsel %vm2823, 1, 0
        %v2840 = vsel %vm2824, 1, 0
        %v2841 = vsel %vm2825, 1, 0
        %v2842 = vsel %vm2826, 1, 0
        %v2843 = vsel %vm2827, 1, 0
        %v2844 = vcvt.s32.f32 %v2828
        %v2845 = vcvt.s32.f32 %v2829
        %v2846 = vcvt.s32.f32 %v2830
        %v2847 = vcvt.s32.f32 %v2831
        %v2848 = vcvt.s32.f32 %v2832
        %v2849 = vcvt.s32.f32 %v2833
        %v2850 = vcvt.s32.f32 %v2834
        %v2851 = vcvt.s32.f32 %v2835
        %v2852 = vcvt.s32.f32 %v2836
        %v2853 = vcvt.s32.f32 %v2837
        %v2854 = vcvt.s32.f32 %v2838
        %v2855 = vcvt.s32.f32 %v2839
        %v2856 = vcvt.s32.f32 %v2840
        %v2857 = vcvt.s32.f32 %v2841
        %v2858 = vcvt.s32.f32 %v2842
        %v2859 = vcvt.s32.f32 %v2843
        %v2860 = vpack.c.bf16 %v2844, %v2844
        %v2861 = vpack.c.bf16 %v2845, %v2845
        %v2862 = vpack.c.bf16 %v2846, %v2846
        %v2863 = vpack.c.bf16 %v2847, %v2847
        %v2864 = vpack.c.bf16 %v2848, %v2848
        %v2865 = vpack.c.bf16 %v2849, %v2849
        %v2866 = vpack.c.bf16 %v2850, %v2850
        %v2867 = vpack.c.bf16 %v2851, %v2851
        %v2868 = vpack.c.bf16 %v2852, %v2852
        %v2869 = vpack.c.bf16 %v2853, %v2853
        %v2870 = vpack.c.bf16 %v2854, %v2854
        %v2871 = vpack.c.bf16 %v2855, %v2855
        %v2872 = vpack.c.bf16 %v2856, %v2856
        %v2873 = vpack.c.bf16 %v2857, %v2857
        %v2874 = vpack.c.bf16 %v2858, %v2858
        %v2875 = vpack.c.bf16 %v2859, %v2859
        %v2876 = vld [vmem:[#allocation2] sm:$0xff]
        %v2877 = vld [vmem:[#allocation2 + $0x8] sm:$0xff]
        %v2878 = vld [vmem:[#allocation2 + $0x10] sm:$0xff]
        %v2879 = vld [vmem:[#allocation2 + $0x18] sm:$0xff]
        %v2880 = vld [vmem:[#allocation2 + $0x20] sm:$0xff]
        %v2881 = vld [vmem:[#allocation2 + $0x28] sm:$0xff]
        %v2882 = vld [vmem:[#allocation2 + $0x30] sm:$0xff]
        %v2883 = vld [vmem:[#allocation2 + $0x38] sm:$0xff]
        %2884 = vmatprep.subr.bf16.mxu0 0
        %2885 = vmatpush1.bf16.msra.mxu0 %v2552
        %2886 = vmatprep.subr.bf16.mxu0 0
        %2887 = vmatpush1.bf16.msra.mxu0 %v2553
        %2888 = vmatprep.subr.bf16.mxu0 0
        %2889 = vmatpush1.bf16.msra.mxu0 %v2554
        %2890 = vmatprep.subr.bf16.mxu0 0
        %2891 = vmatpush1.bf16.msra.mxu0 %v2555
        %2892 = vmatprep.subr.bf16.mxu0 0
        %2893 = vmatpush1.bf16.msra.mxu0 %v2556
        %2894 = vmatprep.subr.bf16.mxu0 0
        %2895 = vmatpush1.bf16.msra.mxu0 %v2557
        %2896 = vmatprep.subr.bf16.mxu0 0
        %2897 = vmatpush1.bf16.msra.mxu0 %v2558
        %2898 = vmatprep.subr.bf16.mxu0 0
        %2899 = vmatpush1.bf16.msra.mxu0 %v2559
        %2900 = vmatprep.subr.bf16.mxu0 0
        %2901 = vmatpush1.bf16.msra.mxu0 %v2560
        %2902 = vmatprep.subr.bf16.mxu0 0
        %2903 = vmatpush1.bf16.msra.mxu0 %v2561
        %2904 = vmatprep.subr.bf16.mxu0 0
        %2905 = vmatpush1.bf16.msra.mxu0 %v2562
        %2906 = vmatprep.subr.bf16.mxu0 0
        %2907 = vmatpush1.bf16.msra.mxu0 %v2563
        %2908 = vmatprep.subr.bf16.mxu0 0
        %2909 = vmatpush1.bf16.msra.mxu0 %v2564
        %2910 = vmatprep.subr.bf16.mxu0 0
        %2911 = vmatpush1.bf16.msra.mxu0 %v2565
        %2912 = vmatprep.subr.bf16.mxu0 0
        %2913 = vmatpush1.bf16.msra.mxu0 %v2566
        %2914 = vmatprep.subr.bf16.mxu0 0
        %2915 = vmatpush1.bf16.msra.mxu0 %v2567
        %2916 = vmatprep.mubr.bf16.mxu0 %v2861
        %2917 = vmatmul.mubr.bf16.gmra.mrb[0].mxu0 %v2860
        %v2918 = vpop.f32.mrb[0].mxu0
        %v2919 = vadd.f32 0.0, %v2918
        %v2920 = vpop.f32.mrb[0].mxu0
        %v2921 = vpop.f32.mrb[0].mxu0
        %v2922 = vpop.f32.mrb[0].mxu0
        %2923 = vdwg.mxu0
        %2924 = vmatprep.subr.bf16.mxu0 0
        %2925 = vmatpush1.bf16.msra.mxu0 %v2568
        %2926 = vmatprep.subr.bf16.mxu0 0
        %2927 = vmatpush1.bf16.msra.mxu0 %v2569
        %2928 = vmatprep.subr.bf16.mxu0 0
        %2929 = vmatpush1.bf16.msra.mxu0 %v2570
        %2930 = vmatprep.subr.bf16.mxu0 0
        %2931 = vmatpush1.bf16.msra.mxu0 %v2571
        %2932 = vmatprep.subr.bf16.mxu0 0
        %2933 = vmatpush1.bf16.msra.mxu0 %v2572
        %2934 = vmatprep.subr.bf16.mxu0 0
        %2935 = vmatpush1.bf16.msra.mxu0 %v2573
        %2936 = vmatprep.subr.bf16.mxu0 0
        %2937 = vmatpush1.bf16.msra.mxu0 %v2574
        %2938 = vmatprep.subr.bf16.mxu0 0
        %2939 = vmatpush1.bf16.msra.mxu0 %v2575
        %2940 = vmatprep.subr.bf16.mxu0 0
        %2941 = vmatpush1.bf16.msra.mxu0 %v2576
        %2942 = vmatprep.subr.bf16.mxu0 0
        %2943 = vmatpush1.bf16.msra.mxu0 %v2577
        %2944 = vmatprep.subr.bf16.mxu0 0
        %2945 = vmatpush1.bf16.msra.mxu0 %v2578
        %2946 = vmatprep.subr.bf16.mxu0 0
        %2947 = vmatpush1.bf16.msra.mxu0 %v2579
        %2948 = vmatprep.subr.bf16.mxu0 0
        %2949 = vmatpush1.bf16.msra.mxu0 %v2580
        %2950 = vmatprep.subr.bf16.mxu0 0
        %2951 = vmatpush1.bf16.msra.mxu0 %v2581
        %2952 = vmatprep.subr.bf16.mxu0 0
        %2953 = vmatpush1.bf16.msra.mxu0 %v2582
        %2954 = vmatprep.subr.bf16.mxu0 0
        %2955 = vmatpush1.bf16.msra.mxu0 %v2583
        %2956 = vmatprep.mubr.bf16.mxu0 %v2863
        %2957 = vmatmul.mubr.bf16.gmra.mrb[0].mxu0 %v2862
        %v2958 = vpop.f32.mrb[0].mxu0
        %v2959 = vadd.f32 0.0, %v2958
        %v2960 = vpop.f32.mrb[0].mxu0
        %v2961 = vpop.f32.mrb[0].mxu0
        %v2962 = vpop.f32.mrb[0].mxu0
        %2963 = vdwg.mxu0
        %2964 = vmatprep.subr.bf16.mxu0 0
        %2965 = vmatpush1.bf16.msra.mxu0 %v2584
        %2966 = vmatprep.subr.bf16.mxu0 0
        %2967 = vmatpush1.bf16.msra.mxu0 %v2585
        %2968 = vmatprep.subr.bf16.mxu0 0
        %2969 = vmatpush1.bf16.msra.mxu0 %v2586
        %2970 = vmatprep.subr.bf16.mxu0 0
        %2971 = vmatpush1.bf16.msra.mxu0 %v2587
        %2972 = vmatprep.subr.bf16.mxu0 0
        %2973 = vmatpush1.bf16.msra.mxu0 %v2588
        %2974 = vmatprep.subr.bf16.mxu0 0
        %2975 = vmatpush1.bf16.msra.mxu0 %v2589
        %2976 = vmatprep.subr.bf16.mxu0 0
        %2977 = vmatpush1.bf16.msra.mxu0 %v2590
        %2978 = vmatprep.subr.bf16.mxu0 0
        %2979 = vmatpush1.bf16.msra.mxu0 %v2591
        %2980 = vmatprep.subr.bf16.mxu0 0
        %2981 = vmatpush1.bf16.msra.mxu0 %v2592
        %2982 = vmatprep.subr.bf16.mxu0 0
        %2983 = vmatpush1.bf16.msra.mxu0 %v2593
        %2984 = vmatprep.subr.bf16.mxu0 0
        %2985 = vmatpush1.bf16.msra.mxu0 %v2594
        %2986 = vmatprep.subr.bf16.mxu0 0
        %2987 = vmatpush1.bf16.msra.mxu0 %v2595
        %2988 = vmatprep.subr.bf16.mxu0 0
        %2989 = vmatpush1.bf16.msra.mxu0 %v2596
        %2990 = vmatprep.subr.bf16.mxu0 0
        %2991 = vmatpush1.bf16.msra.mxu0 %v2597
        %2992 = vmatprep.subr.bf16.mxu0 0
        %2993 = vmatpush1.bf16.msra.mxu0 %v2598
        %2994 = vmatprep.subr.bf16.mxu0 0
        %2995 = vmatpush1.bf16.msra.mxu0 %v2599
        %2996 = vmatprep.mubr.bf16.mxu0 %v2865
        %2997 = vmatmul.mubr.bf16.gmra.mrb[0].mxu0 %v2864
        %v2998 = vpop.f32.mrb[0].mxu0
        %v2999 = vadd.f32 0.0, %v2998
        %v3000 = vpop.f32.mrb[0].mxu0
        %v3001 = vpop.f32.mrb[0].mxu0
        %v3002 = vpop.f32.mrb[0].mxu0
        %3003 = vdwg.mxu0
        %3004 = vmatprep.subr.bf16.mxu0 0
        %3005 = vmatpush1.bf16.msra.mxu0 %v2600
        %3006 = vmatprep.subr.bf16.mxu0 0
        %3007 = vmatpush1.bf16.msra.mxu0 %v2601
        %3008 = vmatprep.subr.bf16.mxu0 0
        %3009 = vmatpush1.bf16.msra.mxu0 %v2602
        %3010 = vmatprep.subr.bf16.mxu0 0
        %3011 = vmatpush1.bf16.msra.mxu0 %v2603
        %3012 = vmatprep.subr.bf16.mxu0 0
        %3013 = vmatpush1.bf16.msra.mxu0 %v2604
        %3014 = vmatprep.subr.bf16.mxu0 0
        %3015 = vmatpush1.bf16.msra.mxu0 %v2605
        %3016 = vmatprep.subr.bf16.mxu0 0
        %3017 = vmatpush1.bf16.msra.mxu0 %v2606
        %3018 = vmatprep.subr.bf16.mxu0 0
        %3019 = vmatpush1.bf16.msra.mxu0 %v2607
        %3020 = vmatprep.subr.bf16.mxu0 0
        %3021 = vmatpush1.bf16.msra.mxu0 %v2608
        %3022 = vmatprep.subr.bf16.mxu0 0
        %3023 = vmatpush1.bf16.msra.mxu0 %v2609
        %3024 = vmatprep.subr.bf16.mxu0 0
        %3025 = vmatpush1.bf16.msra.mxu0 %v2610
        %3026 = vmatprep.subr.bf16.mxu0 0
        %3027 = vmatpush1.bf16.msra.mxu0 %v2611
        %3028 = vmatprep.subr.bf16.mxu0 0
        %3029 = vmatpush1.bf16.msra.mxu0 %v2612
        %3030 = vmatprep.subr.bf16.mxu0 0
        %3031 = vmatpush1.bf16.msra.mxu0 %v2613
        %3032 = vmatprep.subr.bf16.mxu0 0
        %3033 = vmatpush1.bf16.msra.mxu0 %v2614
        %3034 = vmatprep.subr.bf16.mxu0 0
        %3035 = vmatpush1.bf16.msra.mxu0 %v2615
        %3036 = vmatprep.mubr.bf16.mxu0 %v2867
        %3037 = vmatmul.mubr.bf16.gmra.mrb[0].mxu0 %v2866
        %v3038 = vpop.f32.mrb[0].mxu0
        %v3039 = vadd.f32 0.0, %v3038
        %v3040 = vpop.f32.mrb[0].mxu0
        %v3041 = vpop.f32.mrb[0].mxu0
        %v3042 = vpop.f32.mrb[0].mxu0
        %3043 = vdwg.mxu0
        %3044 = vmatprep.subr.bf16.mxu0 0
        %3045 = vmatpush1.bf16.msra.mxu0 %v2616
        %3046 = vmatprep.subr.bf16.mxu0 0
        %3047 = vmatpush1.bf16.msra.mxu0 %v2617
        %3048 = vmatprep.subr.bf16.mxu0 0
        %3049 = vmatpush1.bf16.msra.mxu0 %v2618
        %3050 = vmatprep.subr.bf16.mxu0 0
        %3051 = vmatpush1.bf16.msra.mxu0 %v2619
        %3052 = vmatprep.subr.bf16.mxu0 0
        %3053 = vmatpush1.bf16.msra.mxu0 %v2620
        %3054 = vmatprep.subr.bf16.mxu0 0
        %3055 = vmatpush1.bf16.msra.mxu0 %v2621
        %3056 = vmatprep.subr.bf16.mxu0 0
        %3057 = vmatpush1.bf16.msra.mxu0 %v2622
        %3058 = vmatprep.subr.bf16.mxu0 0
        %3059 = vmatpush1.bf16.msra.mxu0 %v2623
        %3060 = vmatprep.subr.bf16.mxu0 0
        %3061 = vmatpush1.bf16.msra.mxu0 %v2624
        %3062 = vmatprep.subr.bf16.mxu0 0
        %3063 = vmatpush1.bf16.msra.mxu0 %v2625
        %3064 = vmatprep.subr.bf16.mxu0 0
        %3065 = vmatpush1.bf16.msra.mxu0 %v2626
        %3066 = vmatprep.subr.bf16.mxu0 0
        %3067 = vmatpush1.bf16.msra.mxu0 %v2627
        %3068 = vmatprep.subr.bf16.mxu0 0
        %3069 = vmatpush1.bf16.msra.mxu0 %v2628
        %3070 = vmatprep.subr.bf16.mxu0 0
        %3071 = vmatpush1.bf16.msra.mxu0 %v2629
        %3072 = vmatprep.subr.bf16.mxu0 0
        %3073 = vmatpush1.bf16.msra.mxu0 %v2630
        %3074 = vmatprep.subr.bf16.mxu0 0
        %3075 = vmatpush1.bf16.msra.mxu0 %v2631
        %3076 = vmatprep.mubr.bf16.mxu0 %v2869
        %3077 = vmatmul.mubr.bf16.gmra.mrb[0].mxu0 %v2868
        %v3078 = vpop.f32.mrb[0].mxu0
        %v3079 = vadd.f32 0.0, %v3078
        %v3080 = vpop.f32.mrb[0].mxu0
        %v3081 = vpop.f32.mrb[0].mxu0
        %v3082 = vpop.f32.mrb[0].mxu0
        %3083 = vdwg.mxu0
        %3084 = vmatprep.subr.bf16.mxu0 0
        %3085 = vmatpush1.bf16.msra.mxu0 %v2632
        %3086 = vmatprep.subr.bf16.mxu0 0
        %3087 = vmatpush1.bf16.msra.mxu0 %v2633
        %3088 = vmatprep.subr.bf16.mxu0 0
        %3089 = vmatpush1.bf16.msra.mxu0 %v2634
        %3090 = vmatprep.subr.bf16.mxu0 0
        %3091 = vmatpush1.bf16.msra.mxu0 %v2635
        %3092 = vmatprep.subr.bf16.mxu0 0
        %3093 = vmatpush1.bf16.msra.mxu0 %v2636
        %3094 = vmatprep.subr.bf16.mxu0 0
        %3095 = vmatpush1.bf16.msra.mxu0 %v2637
        %3096 = vmatprep.subr.bf16.mxu0 0
        %3097 = vmatpush1.bf16.msra.mxu0 %v2638
        %3098 = vmatprep.subr.bf16.mxu0 0
        %3099 = vmatpush1.bf16.msra.mxu0 %v2639
        %3100 = vmatprep.subr.bf16.mxu0 0
        %3101 = vmatpush1.bf16.msra.mxu0 %v2640
        %3102 = vmatprep.subr.bf16.mxu0 0
        %3103 = vmatpush1.bf16.msra.mxu0 %v2641
        %3104 = vmatprep.subr.bf16.mxu0 0
        %3105 = vmatpush1.bf16.msra.mxu0 %v2642
        %3106 = vmatprep.subr.bf16.mxu0 0
        %3107 = vmatpush1.bf16.msra.mxu0 %v2643
        %3108 = vmatprep.subr.bf16.mxu0 0
        %3109 = vmatpush1.bf16.msra.mxu0 %v2644
        %3110 = vmatprep.subr.bf16.mxu0 0
        %3111 = vmatpush1.bf16.msra.mxu0 %v2645
        %3112 = vmatprep.subr.bf16.mxu0 0
        %3113 = vmatpush1.bf16.msra.mxu0 %v2646
        %3114 = vmatprep.subr.bf16.mxu0 0
        %3115 = vmatpush1.bf16.msra.mxu0 %v2647
        %3116 = vmatprep.mubr.bf16.mxu0 %v2871
        %3117 = vmatmul.mubr.bf16.gmra.mrb[0].mxu0 %v2870
        %v3118 = vpop.f32.mrb[0].mxu0
        %v3119 = vadd.f32 0.0, %v3118
        %v3120 = vpop.f32.mrb[0].mxu0
        %v3121 = vpop.f32.mrb[0].mxu0
        %v3122 = vpop.f32.mrb[0].mxu0
        %3123 = vdwg.mxu0
        %3124 = vmatprep.subr.bf16.mxu0 0
        %3125 = vmatpush1.bf16.msra.mxu0 %v2648
        %3126 = vmatprep.subr.bf16.mxu0 0
        %3127 = vmatpush1.bf16.msra.mxu0 %v2649
        %3128 = vmatprep.subr.bf16.mxu0 0
        %3129 = vmatpush1.bf16.msra.mxu0 %v2650
        %3130 = vmatprep.subr.bf16.mxu0 0
        %3131 = vmatpush1.bf16.msra.mxu0 %v2651
        %3132 = vmatprep.subr.bf16.mxu0 0
        %3133 = vmatpush1.bf16.msra.mxu0 %v2652
        %3134 = vmatprep.subr.bf16.mxu0 0
        %3135 = vmatpush1.bf16.msra.mxu0 %v2653
        %3136 = vmatprep.subr.bf16.mxu0 0
        %3137 = vmatpush1.bf16.msra.mxu0 %v2654
        %3138 = vmatprep.subr.bf16.mxu0 0
        %3139 = vmatpush1.bf16.msra.mxu0 %v2655
        %3140 = vmatprep.subr.bf16.mxu0 0
        %3141 = vmatpush1.bf16.msra.mxu0 %v2656
        %3142 = vmatprep.subr.bf16.mxu0 0
        %3143 = vmatpush1.bf16.msra.mxu0 %v2657
        %3144 = vmatprep.subr.bf16.mxu0 0
        %3145 = vmatpush1.bf16.msra.mxu0 %v2658
        %3146 = vmatprep.subr.bf16.mxu0 0
        %3147 = vmatpush1.bf16.msra.mxu0 %v2659
        %3148 = vmatprep.subr.bf16.mxu0 0
        %3149 = vmatpush1.bf16.msra.mxu0 %v2660
        %3150 = vmatprep.subr.bf16.mxu0 0
        %3151 = vmatpush1.bf16.msra.mxu0 %v2661
        %3152 = vmatprep.subr.bf16.mxu0 0
        %3153 = vmatpush1.bf16.msra.mxu0 %v2662
        %3154 = vmatprep.subr.bf16.mxu0 0
        %3155 = vmatpush1.bf16.msra.mxu0 %v2663
        %3156 = vmatprep.mubr.bf16.mxu0 %v2873
        %3157 = vmatmul.mubr.bf16.gmra.mrb[0].mxu0 %v2872
        %v3158 = vpop.f32.mrb[0].mxu0
        %v3159 = vadd.f32 0.0, %v3158
        %v3160 = vpop.f32.mrb[0].mxu0
        %v3161 = vpop.f32.mrb[0].mxu0
        %v3162 = vpop.f32.mrb[0].mxu0
        %3163 = vdwg.mxu0
        %3164 = vmatprep.subr.bf16.mxu0 0
        %3165 = vmatpush1.bf16.msra.mxu0 %v2664
        %3166 = vmatprep.subr.bf16.mxu0 0
        %3167 = vmatpush1.bf16.msra.mxu0 %v2665
        %3168 = vmatprep.subr.bf16.mxu0 0
        %3169 = vmatpush1.bf16.msra.mxu0 %v2666
        %3170 = vmatprep.subr.bf16.mxu0 0
        %3171 = vmatpush1.bf16.msra.mxu0 %v2667
        %3172 = vmatprep.subr.bf16.mxu0 0
        %3173 = vmatpush1.bf16.msra.mxu0 %v2668
        %3174 = vmatprep.subr.bf16.mxu0 0
        %3175 = vmatpush1.bf16.msra.mxu0 %v2669
        %3176 = vmatprep.subr.bf16.mxu0 0
        %3177 = vmatpush1.bf16.msra.mxu0 %v2670
        %3178 = vmatprep.subr.bf16.mxu0 0
        %3179 = vmatpush1.bf16.msra.mxu0 %v2671
        %3180 = vmatprep.subr.bf16.mxu0 0
        %3181 = vmatpush1.bf16.msra.mxu0 %v2672
        %3182 = vmatprep.subr.bf16.mxu0 0
        %3183 = vmatpush1.bf16.msra.mxu0 %v2673
        %3184 = vmatprep.subr.bf16.mxu0 0
        %3185 = vmatpush1.bf16.msra.mxu0 %v2674
        %3186 = vmatprep.subr.bf16.mxu0 0
        %3187 = vmatpush1.bf16.msra.mxu0 %v2675
        %3188 = vmatprep.subr.bf16.mxu0 0
        %3189 = vmatpush1.bf16.msra.mxu0 %v2676
        %3190 = vmatprep.subr.bf16.mxu0 0
        %3191 = vmatpush1.bf16.msra.mxu0 %v2677
        %3192 = vmatprep.subr.bf16.mxu0 0
        %3193 = vmatpush1.bf16.msra.mxu0 %v2678
        %3194 = vmatprep.subr.bf16.mxu0 0
        %3195 = vmatpush1.bf16.msra.mxu0 %v2679
        %3196 = vmatprep.mubr.bf16.mxu0 %v2875
        %3197 = vmatmul.mubr.bf16.gmra.mrb[0].mxu0 %v2874
        %v3198 = vpop.f32.mrb[0].mxu0
        %v3199 = vadd.f32 0.0, %v3198
        %v3200 = vpop.f32.mrb[0].mxu0
        %v3201 = vpop.f32.mrb[0].mxu0
        %v3202 = vpop.f32.mrb[0].mxu0
        %3203 = vdwg.mxu0
        %v3204 = vadd.f32 %v2876, %v2919
        %v3205 = vadd.f32 %v2877, %v2959
        %v3206 = vadd.f32 %v2878, %v2999
        %v3207 = vadd.f32 %v2879, %v3039
        %v3208 = vadd.f32 %v2880, %v3079
        %v3209 = vadd.f32 %v2881, %v3119
        %v3210 = vadd.f32 %v2882, %v3159
        %v3211 = vadd.f32 %v2883, %v3199
        %3212 = vst [vmem:[#allocation2] sm:$0xff] %v3204
        %3213 = vst [vmem:[#allocation2 + $0x8] sm:$0xff] %v3205
        %3214 = vst [vmem:[#allocation2 + $0x10] sm:$0xff] %v3206
        %3215 = vst [vmem:[#allocation2 + $0x18] sm:$0xff] %v3207
        %3216 = vst [vmem:[#allocation2 + $0x20] sm:$0xff] %v3208
        %3217 = vst [vmem:[#allocation2 + $0x28] sm:$0xff] %v3209
        %3218 = vst [vmem:[#allocation2 + $0x30] sm:$0xff] %v3210
        %3219 = vst [vmem:[#allocation2 + $0x38] sm:$0xff] %v3211
        // Predicated region
        $region33: #{tpu_custom_call.1} parent=23 // pred_check
          %p3220 = pneg %p164
        $region34: #{tpu_custom_call.1} parent=23 // pred_check_branch
          %3222 = sbr.rel (%p3220) target = $region36
        $region35: #{tpu_custom_call.1} parent=23 // pred_region
          %v3223 = vld [vmem:[#allocation2] sm:$0xff]
          %v3224 = vld [vmem:[#allocation2 + $0x8] sm:$0xff]
          %v3225 = vld [vmem:[#allocation2 + $0x10] sm:$0xff]
          %v3226 = vld [vmem:[#allocation2 + $0x18] sm:$0xff]
          %v3227 = vld [vmem:[#allocation2 + $0x20] sm:$0xff]
          %v3228 = vld [vmem:[#allocation2 + $0x28] sm:$0xff]
          %v3229 = vld [vmem:[#allocation2 + $0x30] sm:$0xff]
          %v3230 = vld [vmem:[#allocation2 + $0x38] sm:$0xff]
          %v3239 = vrot.slane %v3224, 7
          %vm3240 = vcmask 1041409
          %v3241 = vsel %vm3240, %v3239, %v3223
          %v3242 = vrot.slane %v3225, 6
          %vm3243 = vcmask 1042434
          %v3244 = vsel %vm3243, %v3242, %v3241
          %v3245 = vrot.slane %v3226, 5
          %vm3246 = vcmask 1043459
          %v3247 = vsel %vm3246, %v3245, %v3244
          %v3248 = vrot.slane %v3227, 4
          %vm3249 = vcmask 1044484
          %v3250 = vsel %vm3249, %v3248, %v3247
          %v3251 = vrot.slane %v3228, 3
          %vm3252 = vcmask 1045509
          %v3253 = vsel %vm3252, %v3251, %v3250
          %v3254 = vrot.slane %v3229, 2
          %vm3255 = vcmask 1046534
          %v3256 = vsel %vm3255, %v3254, %v3253
          %v3257 = vrot.slane %v3230, 1
          %vm3258 = vcmask 1047559
          %v3259 = vsel %vm3258, %v3257, %v3256
          %v3261 = vadd.f32 %v3259, 0.0
          %v3262 = vrot.slane %v3223, 1
          %v3263 = vsel %vm3240, %v3224, %v3262
          %v3264 = vrot.slane %v3225, 7
          %v3265 = vsel %vm3243, %v3264, %v3263
          %v3266 = vrot.slane %v3226, 6
          %v3267 = vsel %vm3246, %v3266, %v3265
          %v3268 = vrot.slane %v3227, 5
          %v3269 = vsel %vm3249, %v3268, %v3267
          %v3270 = vrot.slane %v3228, 4
          %v3271 = vsel %vm3252, %v3270, %v3269
          %v3272 = vrot.slane %v3229, 3
          %v3273 = vsel %vm3255, %v3272, %v3271
          %v3274 = vrot.slane %v3230, 2
          %v3275 = vsel %vm3258, %v3274, %v3273
          %3276 = vrot.lane.b32.xlu0 %v3275, 64
          %v3277 = vpop.permute.xlu0 %3276
          %vm3279 = vcmask 523264
          %v3280 = vsel %vm3279, 0.0, %v3277
          %v3281 = vsel %vm3279, %v3277, 0.0
          %v3282 = vadd.f32 %v3261, %v3280
          %v3283 = vadd.f32 %v3281, 0.0
          %v3284 = vrot.slane %v3223, 2
          %v3285 = vrot.slane %v3224, 1
          %v3286 = vsel %vm3240, %v3285, %v3284
          %v3287 = vsel %vm3243, %v3225, %v3286
          %v3288 = vrot.slane %v3226, 7
          %v3289 = vsel %vm3246, %v3288, %v3287
          %v3290 = vrot.slane %v3227, 6
          %v3291 = vsel %vm3249, %v3290, %v3289
          %v3292 = vrot.slane %v3228, 5
          %v3293 = vsel %vm3252, %v3292, %v3291
          %v3294 = vrot.slane %v3229, 4
          %v3295 = vsel %vm3255, %v3294, %v3293
          %v3296 = vrot.slane %v3230, 3
          %v3297 = vsel %vm3258, %v3296, %v3295
          %v3299 = vadd.f32 %v3282, 0.0
          %v3300 = vadd.f32 %v3283, %v3297
          %3301 = vst [vmem:[%s160] sm:$0xff] %v3299
          %3302 = vst [vmem:[%s160 + $0x8] sm:$0xff] %v3300
        $region36: #{tpu_custom_call.1} parent=23 // pred_fallthru
          _
        %s3303 = sand.u32 %s77, 1
        %s3304 = scalar_lea.sflag [#allocation5], %s3303
        %s3305 = sand.u32 %s77, 1
        %s3306 = smul.addr %s3305, 16
        %s3307 = scalar_lea.vmem [#allocation6], %s3306
        // Predicated region
        $region37: #{tpu_custom_call.1} parent=23 // pred_check
          %p3308 = pneg %p87
        $region38: #{tpu_custom_call.1} parent=23 // pred_check_branch
          %3310 = sbr.rel (%p3308) target = $region40
        $region39: #{tpu_custom_call.1} parent=23 // pred_region
          %s3312 = ssub.s32 256, 256
          %3313 = vsyncadd %s3304, %s3312
          %s3314 = smul.addr %s23, 2
          %s3315 = smul.addr %s24, 4
          %s3316 = sadd.s32 %s3314, %s3315
          %s3317 = smul.addr %s3316, 128
          %s3318 = scalar_lea.hbm %s1, %s3317
          %s3320 = sshll.u32 %s3307, 4
          %s3321 = int_to_ptr.vmem [resolvable:$true] %s3320
          %3323 = dma.vmem_to_hbm [thread:$0]  %s3321, 256, %s3318, %s3304
        $region40: #{tpu_custom_call.1} parent=23 // pred_fallthru
          _
      $region24: #{tpu_custom_call.1} parent=5 // pred_fallthru
        _
      %p3324 = scmp.le.s32.totalorder 2, %s13
      // Predicated region
      $region41: #{tpu_custom_call.1} parent=5 // pred_check
        %p3325 = pneg %p3324
      $region42: #{tpu_custom_call.1} parent=5 // pred_check_branch
        %3327 = sbr.rel (%p3325) target = $region44
      $region43: #{tpu_custom_call.1} parent=5 // pred_region
        %s3328 = ssub.s32 %s13, 2
        // Predicated region
        $region45: #{tpu_custom_call.1} parent=43 // pred_check
          %p3329 = pneg %p93
        $region46: #{tpu_custom_call.1} parent=43 // pred_check_branch
          %3331 = sbr.rel (%p3329) target = $region48
        $region47: #{tpu_custom_call.1} parent=43 // pred_region
          %s3332 = sand.u32 %s78, 1
          %s3333 = scalar_lea.sflag [#allocation5], %s3332
          %s3334 = sand.u32 %s78, 1
          %s3335 = smul.addr %s3334, 16
          %s3336 = scalar_lea.vmem [#allocation6], %s3335
          %3337 = dma.done %s3333, 256
        $region48: #{tpu_custom_call.1} parent=43 // pred_fallthru
          _
      $region44: #{tpu_custom_call.1} parent=5 // pred_fallthru
        _
    $region6: #{tpu_custom_call.1} parent=1 // loop_footer
      %s17 = sadd.s32 1, %s13
    $region7: #{tpu_custom_call.1} parent=1 // loop_footer_branch
      %12 = sbr.rel target = $region3
    $region8: #{tpu_custom_call.1} parent=1 // loop_exit
      _
    %3338 = vsyncpa [#allocation4], 1
    %s3339 = scalar_lea.sflag [#allocation4], 1
    %3340 = vsyncpa %s3339, 1
    %3341 = vsyncpa [#allocation5], 1
    %s3342 = scalar_lea.sflag [#allocation5], 1
    %3343 = vsyncpa %s3342, 1

</llo_original>
